<compile_context>
chip_gen: v7x
topology: tpu7x:2x2x1
jax: 0.10.0
libtpu: 0.0.40
codegen_flags: <defaults>
</compile_context>

<pallas_src>
import jax
import jax.numpy as jnp
import numpy as np
from jax import lax
from jax.experimental import pallas as pl
from jax.experimental.pallas import tpu as pltpu

KSIZE = 3                       # depthwise conv kernel size (padding="same")
_GELU_C0 = 0.7978845608028654   # sqrt(2/pi)
_GELU_C1 = 0.044715


def _row_chunks(H, W):
    """Static (row_start, n_rows) chunks.

    rows is chosen so one (rows, W, 128) f32 value is ~8 vregs (bounded live
    ranges with 3 accumulators in flight); the last chunk may be shorter
    (static tail) instead of shrinking every chunk to gcd(H, 8).
    """
    rows = max(1, min(H, 8, 64 // max(1, W)))
    chunks, r0 = [], 0
    while r0 < H:
        chunks.append((r0, min(rows, H - r0)))
        r0 += rows
    return tuple(chunks)


def _residual_block_kernel(x_ref, w_ref, scale_ref, bias_ref, o_ref):
    """One (channel-tile, batch) block per grid step.

    x_ref    : (1, H, W, C_TILE)   input tile (VMEM), channels on lanes
    w_ref    : (3, 3, C_TILE)      depthwise conv weights
    scale_ref: (1, 1, C_TILE)      folded BN scale = gamma / sqrt(var + eps)
    bias_ref : (1, 1, C_TILE)      folded BN bias  = beta - mean * scale
    o_ref    : (1, H, W, C_TILE)   output = fn(x) + x
    """
    f32 = jnp.float32
    _, H, W, C_TILE = x_ref.shape
    C_SUB = 128 if C_TILE % 128 == 0 else C_TILE     # one lane-width per compute group
    chunks = _row_chunks(H, W)

    for c0 in range(0, C_TILE, C_SUB):               # static channel sub-loop
        csl = slice(c0, c0 + C_SUB)

        # Per-tap weights / BN affine hoisted out of the row loop (1 vreg each).
        w_t = [[w_ref[kh:kh + 1, kw:kw + 1, csl].astype(f32)      # (1,1,C_SUB)
                for kw in range(KSIZE)] for kh in range(KSIZE)]
        scale = scale_ref[:, :, csl].astype(f32)                  # (1,1,C_SUB)
        bias = bias_ref[:, :, csl].astype(f32)                    # (1,1,C_SUB)

        def load_slab(r0, nr, dh):
            """x rows [r0+dh, r0+dh+nr) with zero rows outside [0, H)."""
            lo, hi = r0 + dh, r0 + dh + nr
            if hi <= 0 or lo >= H:
                return None                                       # fully in zero halo
            body = x_ref[0, max(lo, 0):min(hi, H), :, csl].astype(f32)
            parts = []
            if lo < 0:                                            # only first chunk, dh=-1
                parts.append(jnp.zeros((-lo, W, C_SUB), f32))
            parts.append(body)
            if hi > H:                                            # only last chunk, dh=+1
                parts.append(jnp.zeros((hi - H, W, C_SUB), f32))
            return parts[0] if len(parts) == 1 else jnp.concatenate(parts, axis=0)

        for r0, nr in chunks:                                     # static, fully unrolled
            # kh-summed accumulators per kernel column (left / center / right);
            # each input slab is loaded exactly once (aligned H-major slice).
            acc_l = acc_c = acc_r = None

            def add(a, b):
                return b if a is None else a + b

            for dh in (-1, 0, 1):
                slab = load_slab(r0, nr, dh)
                if slab is None:
                    continue
                kh = dh + 1
                acc_l = add(acc_l, slab * w_t[kh][0])
                acc_c = add(acc_c, slab * w_t[kh][1])
                acc_r = add(acc_r, slab * w_t[kh][2])

            # "same"-padding column shifts: one roll per side on the W (sublane)
            # axis — XLU work — with the single wrap column masked to zero.
            col = lax.broadcasted_iota(jnp.int32, (nr, W, C_SUB), 1)
            acc = acc_c
            acc = acc + jnp.where(col >= 1, pltpu.roll(acc_l, 1, axis=1), 0.0)
            acc = acc + jnp.where(col <= W - 2, pltpu.roll(acc_r, W - 1, axis=1), 0.0)

            # GELU (tanh approximation; tanh runs on the EUP slot).
            g = 0.5 * acc * (1.0 + jnp.tanh(
                _GELU_C0 * (acc + _GELU_C1 * (acc * acc * acc))))

            # BatchNorm (inference, folded affine) + residual add.
            x_res = x_ref[0, r0:r0 + nr, :, csl].astype(f32)
            y = g * scale + bias + x_res
            o_ref[0, r0:r0 + nr, :, csl] = y.astype(o_ref.dtype)


def _pick_c_tile(B, C):
    """Largest 128-multiple channel tile that still leaves >= 4 grid steps."""
    if C % 128 != 0:
        # TODO(synk): pad C up to a multiple of 128 instead of a lane-sparse tile.
        return C
    for ct in (512, 256, 128):
        if C % ct == 0 and B * (C // ct) >= 4:
            return ct
    return 128


def residual_convmixer_block_nhwc(x, w_dw, gamma, beta, run_mean, run_var,
                                  eps=1e-5, c_tile=None):
    """Fused Residual(depthwise ConvMixer block) in NHWC (channels-last).

    x     : (B, H, W, C) — channels-last activations (preferred layout).
    w_dw  : (C, 1, 3, 3) — PyTorch depthwise Conv2d weight.
    gamma, beta, run_mean, run_var : (C,) — BatchNorm2d parameters / stats.
    Returns (B, H, W, C) = fn(x) + x.
    """
    B, H, W, C = x.shape
    if c_tile is None:
        c_tile = _pick_c_tile(B, C)
    if C % c_tile != 0:
        c_tile = C

    # depthwise weights: (C,1,3,3) -> (3,3,C); fold BN into a single affine.
    w = jnp.transpose(w_dw[:, 0, :, :], (1, 2, 0)).astype(jnp.float32)
    s = gamma / jnp.sqrt(run_var + eps)
    scale = s.reshape(1, 1, C).astype(jnp.float32)
    bias = (beta - run_mean * s).reshape(1, 1, C).astype(jnp.float32)

    # VMEM budget: 2 buffers each for the in/out activation blocks, tiny param
    # blocks, plus margin for compiler-internal scratch; capped under v7x 64 MiB.
    blk = H * W * c_tile * x.dtype.itemsize
    params = (KSIZE * KSIZE + 2) * c_tile * 4
    vmem_limit = int(min(max(4 * blk + 2 * params + (8 << 20), 16 << 20), 48 << 20))

    # Grid (C tiles, B) with B innermost: the weight/scale/bias block index is
    # constant across consecutive steps, so they are DMA'd once per channel tile.
    grid = (C // c_tile, B)
    return pl.pallas_call(
        _residual_block_kernel,
        out_shape=jax.ShapeDtypeStruct((B, H, W, C), x.dtype),
        grid_spec=pltpu.PrefetchScalarGridSpec(
            num_scalar_prefetch=0,
            grid=grid,
            in_specs=[
                pl.BlockSpec((1, H, W, c_tile), lambda c, b: (b, 0, 0, c)),
                pl.BlockSpec((KSIZE, KSIZE, c_tile), lambda c, b: (0, 0, c)),
                pl.BlockSpec((1, 1, c_tile), lambda c, b: (0, 0, c)),
                pl.BlockSpec((1, 1, c_tile), lambda c, b: (0, 0, c)),
            ],
            out_specs=pl.BlockSpec((1, H, W, c_tile), lambda c, b: (b, 0, 0, c)),
        ),
        compiler_params=pltpu.CompilerParams(
            dimension_semantics=("parallel", "parallel"),
            vmem_limit_bytes=vmem_limit),
    )(x, w, scale, bias)


def residual_convmixer_block_nchw(x_nchw, w_dw, gamma, beta, run_mean, run_var,
                                  eps=1e-5):
    """Convenience wrapper matching the PyTorch NCHW layout.

    For stacked ConvMixer blocks keep activations NHWC and call
    residual_convmixer_block_nhwc directly — each transpose here is an extra
    HBM round trip of the activation.
    """
    x = jnp.transpose(x_nchw, (0, 2, 3, 1))                       # NCHW -> NHWC
    out = residual_convmixer_block_nhwc(x, w_dw, gamma, beta,
                                        run_mean, run_var, eps=eps)
    return jnp.transpose(out, (0, 3, 1, 2))                       # NHWC -> NCHW


def _reference_nchw(x_nchw, w_dw, gamma, beta, run_mean, run_var, eps=1e-5):
    """Pure-JAX reference with identical math (shifted-slice depthwise conv)."""
    B, C, H, W = x_nchw.shape
    x = jnp.transpose(x_nchw, (0, 2, 3, 1))
    xpad = jnp.pad(x, ((0, 0), (1, 1), (1, 1), (0, 0)))
    w = jnp.transpose(w_dw[:, 0, :, :], (1, 2, 0))
    acc = jnp.zeros_like(x)
    for kh in range(KSIZE):
        for kw in range(KSIZE):
            acc = acc + xpad[:, kh:kh + H, kw:kw + W, :] * w[kh, kw, :]
    g = 0.5 * acc * (1.0 + jnp.tanh(_GELU_C0 * (acc + _GELU_C1 * (acc * acc * acc))))
    s = gamma / jnp.sqrt(run_var + eps)
    y = g * s + (beta - run_mean * s)
    out = y + x
    return jnp.transpose(out, (0, 3, 1, 2))


if __name__ == "__main__":
    # C is a multiple of 128 so the channel (lane) dimension is fully dense.
    B, C, H, W = 2, 256, 16, 16
    key = jax.random.PRNGKey(0)
    k_x, k_w, k_g, k_b, k_m, k_v = jax.random.split(key, 6)

    x = jax.random.normal(k_x, (B, C, H, W), jnp.float32)
    # deterministic "parameters" for fn (ConvMixer depthwise block)
    w_dw = 0.1 * jax.random.normal(k_w, (C, 1, KSIZE, KSIZE), jnp.float32)
    gamma = 1.0 + 0.05 * jax.random.normal(k_g, (C,), jnp.float32)
    beta = 0.05 * jax.random.normal(k_b, (C,), jnp.float32)
    run_mean = 0.05 * jax.random.normal(k_m, (C,), jnp.float32)
    run_var = jnp.abs(1.0 + 0.05 * jax.random.normal(k_v, (C,), jnp.float32))

    out = residual_convmixer_block_nchw(x, w_dw, gamma, beta, run_mean, run_var)
    out = jax.block_until_ready(out)

    ref = _reference_nchw(x, w_dw, gamma, beta, run_mean, run_var)
    np.testing.assert_allclose(np.asarray(out), np.asarray(ref),
                               rtol=1e-5, atol=1e-4)
    print("KERNEL_OK")
</pallas_src>

<mosaic_0001>
module attributes {stable_mosaic.version = 11 : i64} {
  func.func @_residual_block_kernel(%arg0: i32, %arg1: i32, %arg2: memref<1x16x16x128xf32, #tpu.memory_space<vmem>>, %arg3: memref<3x3x128xf32, #tpu.memory_space<vmem>>, %arg4: memref<1x1x128xf32, #tpu.memory_space<vmem>>, %arg5: memref<1x1x128xf32, #tpu.memory_space<vmem>>, %arg6: memref<1x16x16x128xf32, #tpu.memory_space<vmem>>) attributes {dimension_semantics = [#tpu.dimension_semantics<parallel>, #tpu.dimension_semantics<parallel>], iteration_bounds = array<i64: 2, 2>, scalar_prefetch = 0 : i64, scratch_operands = 0 : i64, tpu.core_type = #tpu.core_type<tc>, window_params = [{transform_indices = @transform_0, window_bounds = array<i64: 1, 16, 16, 128>}, {transform_indices = @transform_1, window_bounds = array<i64: 3, 3, 128>}, {transform_indices = @transform_2, window_bounds = array<i64: 1, 1, 128>}, {transform_indices = @transform_3, window_bounds = array<i64: 1, 1, 128>}, {transform_indices = @transform_4, window_bounds = array<i64: 1, 16, 16, 128>}]} {
    %c0 = arith.constant 0 : index
    %c0_0 = arith.constant 0 : index
    %c0_1 = arith.constant 0 : index
    %0 = vector.load %arg3[%c0, %c0_0, %c0_1] : memref<3x3x128xf32, #tpu.memory_space<vmem>>, vector<1x1x128xf32>
    %c0_2 = arith.constant 0 : index
    %c1 = arith.constant 1 : index
    %c0_3 = arith.constant 0 : index
    %1 = vector.load %arg3[%c0_2, %c1, %c0_3] : memref<3x3x128xf32, #tpu.memory_space<vmem>>, vector<1x1x128xf32>
    %c0_4 = arith.constant 0 : index
    %c2 = arith.constant 2 : index
    %c0_5 = arith.constant 0 : index
    %2 = vector.load %arg3[%c0_4, %c2, %c0_5] : memref<3x3x128xf32, #tpu.memory_space<vmem>>, vector<1x1x128xf32>
    %c1_6 = arith.constant 1 : index
    %c0_7 = arith.constant 0 : index
    %c0_8 = arith.constant 0 : index
    %3 = vector.load %arg3[%c1_6, %c0_7, %c0_8] : memref<3x3x128xf32, #tpu.memory_space<vmem>>, vector<1x1x128xf32>
    %c1_9 = arith.constant 1 : index
    %c1_10 = arith.constant 1 : index
    %c0_11 = arith.constant 0 : index
    %4 = vector.load %arg3[%c1_9, %c1_10, %c0_11] : memref<3x3x128xf32, #tpu.memory_space<vmem>>, vector<1x1x128xf32>
    %c1_12 = arith.constant 1 : index
    %c2_13 = arith.constant 2 : index
    %c0_14 = arith.constant 0 : index
    %5 = vector.load %arg3[%c1_12, %c2_13, %c0_14] : memref<3x3x128xf32, #tpu.memory_space<vmem>>, vector<1x1x128xf32>
    %c2_15 = arith.constant 2 : index
    %c0_16 = arith.constant 0 : index
    %c0_17 = arith.constant 0 : index
    %6 = vector.load %arg3[%c2_15, %c0_16, %c0_17] : memref<3x3x128xf32, #tpu.memory_space<vmem>>, vector<1x1x128xf32>
    %c2_18 = arith.constant 2 : index
    %c1_19 = arith.constant 1 : index
    %c0_20 = arith.constant 0 : index
    %7 = vector.load %arg3[%c2_18, %c1_19, %c0_20] : memref<3x3x128xf32, #tpu.memory_space<vmem>>, vector<1x1x128xf32>
    %c2_21 = arith.constant 2 : index
    %c2_22 = arith.constant 2 : index
    %c0_23 = arith.constant 0 : index
    %8 = vector.load %arg3[%c2_21, %c2_22, %c0_23] : memref<3x3x128xf32, #tpu.memory_space<vmem>>, vector<1x1x128xf32>
    %c0_24 = arith.constant 0 : index
    %c0_25 = arith.constant 0 : index
    %c0_26 = arith.constant 0 : index
    %9 = vector.load %arg4[%c0_24, %c0_25, %c0_26] : memref<1x1x128xf32, #tpu.memory_space<vmem>>, vector<1x1x128xf32>
    %c0_27 = arith.constant 0 : index
    %c0_28 = arith.constant 0 : index
    %c0_29 = arith.constant 0 : index
    %10 = vector.load %arg5[%c0_27, %c0_28, %c0_29] : memref<1x1x128xf32, #tpu.memory_space<vmem>>, vector<1x1x128xf32>
    %c0_30 = arith.constant 0 : index
    %c0_31 = arith.constant 0 : index
    %c0_32 = arith.constant 0 : index
    %c0_33 = arith.constant 0 : index
    %11 = vector.load %arg2[%c0_30, %c0_31, %c0_32, %c0_33] : memref<1x16x16x128xf32, #tpu.memory_space<vmem>>, vector<1x3x16x128xf32>
    %12 = vector.shape_cast %11 : vector<1x3x16x128xf32> to vector<3x16x128xf32>
    %cst = arith.constant 0.000000e+00 : f32
    %13 = vector.broadcast %cst : f32 to vector<1x16x128xf32>
    %14 = tpu.concatenate %13, %12 in 0 : vector<1x16x128xf32>, vector<3x16x128xf32> -> vector<4x16x128xf32>
    %15 = vector.broadcast %0 : vector<1x1x128xf32> to vector<4x16x128xf32>
    %16 = arith.mulf %14, %15 : vector<4x16x128xf32>
    %17 = vector.broadcast %1 : vector<1x1x128xf32> to vector<4x16x128xf32>
    %18 = arith.mulf %14, %17 : vector<4x16x128xf32>
    %19 = vector.broadcast %2 : vector<1x1x128xf32> to vector<4x16x128xf32>
    %20 = arith.mulf %14, %19 : vector<4x16x128xf32>
    %c0_34 = arith.constant 0 : index
    %c0_35 = arith.constant 0 : index
    %c0_36 = arith.constant 0 : index
    %c0_37 = arith.constant 0 : index
    %21 = vector.load %arg2[%c0_34, %c0_35, %c0_36, %c0_37] : memref<1x16x16x128xf32, #tpu.memory_space<vmem>>, vector<1x4x16x128xf32>
    %22 = vector.shape_cast %21 : vector<1x4x16x128xf32> to vector<4x16x128xf32>
    %23 = vector.broadcast %3 : vector<1x1x128xf32> to vector<4x16x128xf32>
    %24 = arith.mulf %22, %23 : vector<4x16x128xf32>
    %25 = arith.addf %16, %24 : vector<4x16x128xf32>
    %26 = vector.broadcast %4 : vector<1x1x128xf32> to vector<4x16x128xf32>
    %27 = arith.mulf %22, %26 : vector<4x16x128xf32>
    %28 = arith.addf %18, %27 : vector<4x16x128xf32>
    %29 = vector.broadcast %5 : vector<1x1x128xf32> to vector<4x16x128xf32>
    %30 = arith.mulf %22, %29 : vector<4x16x128xf32>
    %31 = arith.addf %20, %30 : vector<4x16x128xf32>
    %c0_38 = arith.constant 0 : index
    %c1_39 = arith.constant 1 : index
    %c0_40 = arith.constant 0 : index
    %c0_41 = arith.constant 0 : index
    %32 = vector.load %arg2[%c0_38, %c1_39, %c0_40, %c0_41] : memref<1x16x16x128xf32, #tpu.memory_space<vmem>>, vector<1x4x16x128xf32>
    %33 = vector.shape_cast %32 : vector<1x4x16x128xf32> to vector<4x16x128xf32>
    %34 = vector.broadcast %6 : vector<1x1x128xf32> to vector<4x16x128xf32>
    %35 = arith.mulf %33, %34 : vector<4x16x128xf32>
    %36 = arith.addf %25, %35 : vector<4x16x128xf32>
    %37 = vector.broadcast %7 : vector<1x1x128xf32> to vector<4x16x128xf32>
    %38 = arith.mulf %33, %37 : vector<4x16x128xf32>
    %39 = arith.addf %28, %38 : vector<4x16x128xf32>
    %40 = vector.broadcast %8 : vector<1x1x128xf32> to vector<4x16x128xf32>
    %41 = arith.mulf %33, %40 : vector<4x16x128xf32>
    %42 = arith.addf %31, %41 : vector<4x16x128xf32>
    %43 = tpu.iota {dimensions = array<i32: 1>} : vector<4x16x128xi32>
    %c1_i32 = arith.constant 1 : i32
    %44 = vector.broadcast %c1_i32 : i32 to vector<4x16x128xi32>
    %45 = arith.cmpi sge, %43, %44 : vector<4x16x128xi32>
    %c1_i32_42 = arith.constant 1 : i32
    %46 = tpu.dynamic_rotate %36 by %c1_i32_42 dim 1 : vector<4x16x128xf32>, i32 -> vector<4x16x128xf32>
    %cst_43 = arith.constant 0.000000e+00 : f32
    %47 = vector.broadcast %cst_43 : f32 to vector<4x16x128xf32>
    %48 = arith.select %45, %46, %47 : vector<4x16x128xi1>, vector<4x16x128xf32>
    %49 = arith.addf %39, %48 : vector<4x16x128xf32>
    %c14_i32 = arith.constant 14 : i32
    %50 = vector.broadcast %c14_i32 : i32 to vector<4x16x128xi32>
    %51 = arith.cmpi sle, %43, %50 : vector<4x16x128xi32>
    %c15_i32 = arith.constant 15 : i32
    %52 = tpu.dynamic_rotate %42 by %c15_i32 dim 1 : vector<4x16x128xf32>, i32 -> vector<4x16x128xf32>
    %cst_44 = arith.constant 0.000000e+00 : f32
    %53 = vector.broadcast %cst_44 : f32 to vector<4x16x128xf32>
    %54 = arith.select %51, %52, %53 : vector<4x16x128xi1>, vector<4x16x128xf32>
    %55 = arith.addf %49, %54 : vector<4x16x128xf32>
    %cst_45 = arith.constant 5.000000e-01 : f32
    %56 = vector.broadcast %cst_45 : f32 to vector<4x16x128xf32>
    %57 = arith.mulf %56, %55 : vector<4x16x128xf32>
    %58 = arith.mulf %55, %55 : vector<4x16x128xf32>
    %59 = arith.mulf %58, %55 : vector<4x16x128xf32>
    %cst_46 = arith.constant 4.471500e-02 : f32
    %60 = vector.broadcast %cst_46 : f32 to vector<4x16x128xf32>
    %61 = arith.mulf %60, %59 : vector<4x16x128xf32>
    %62 = arith.addf %55, %61 : vector<4x16x128xf32>
    %cst_47 = arith.constant 0.797884583 : f32
    %63 = vector.broadcast %cst_47 : f32 to vector<4x16x128xf32>
    %64 = arith.mulf %63, %62 : vector<4x16x128xf32>
    %65 = math.tanh %64 : vector<4x16x128xf32>
    %cst_48 = arith.constant 1.000000e+00 : f32
    %66 = vector.broadcast %cst_48 : f32 to vector<4x16x128xf32>
    %67 = arith.addf %66, %65 : vector<4x16x128xf32>
    %68 = arith.mulf %57, %67 : vector<4x16x128xf32>
    %c0_49 = arith.constant 0 : index
    %c0_50 = arith.constant 0 : index
    %c0_51 = arith.constant 0 : index
    %c0_52 = arith.constant 0 : index
    %69 = vector.load %arg2[%c0_49, %c0_50, %c0_51, %c0_52] : memref<1x16x16x128xf32, #tpu.memory_space<vmem>>, vector<1x4x16x128xf32>
    %70 = vector.shape_cast %69 : vector<1x4x16x128xf32> to vector<4x16x128xf32>
    %71 = vector.broadcast %9 : vector<1x1x128xf32> to vector<4x16x128xf32>
    %72 = arith.mulf %68, %71 : vector<4x16x128xf32>
    %73 = vector.broadcast %10 : vector<1x1x128xf32> to vector<4x16x128xf32>
    %74 = arith.addf %72, %73 : vector<4x16x128xf32>
    %75 = arith.addf %74, %70 : vector<4x16x128xf32>
    %c0_53 = arith.constant 0 : index
    %c0_54 = arith.constant 0 : index
    %c0_55 = arith.constant 0 : index
    %c0_56 = arith.constant 0 : index
    %76 = vector.load %arg6[%c0_53, %c0_54, %c0_55, %c0_56] : memref<1x16x16x128xf32, #tpu.memory_space<vmem>>, vector<1x4x16x128xf32>
    %77 = vector.shape_cast %76 : vector<1x4x16x128xf32> to vector<4x16x128xf32>
    %78 = vector.shape_cast %75 : vector<4x16x128xf32> to vector<1x4x16x128xf32>
    tpu.vector_store %arg6[%c0_53, %c0_54, %c0_55, %c0_56], %78 {strides = array<i32>} : memref<1x16x16x128xf32, #tpu.memory_space<vmem>>, vector<1x4x16x128xf32>,
    %c0_57 = arith.constant 0 : index
    %c3 = arith.constant 3 : index
    %c0_58 = arith.constant 0 : index
    %c0_59 = arith.constant 0 : index
    %79 = vector.load %arg2[%c0_57, %c3, %c0_58, %c0_59] : memref<1x16x16x128xf32, #tpu.memory_space<vmem>>, vector<1x4x16x128xf32>
    %80 = vector.shape_cast %79 : vector<1x4x16x128xf32> to vector<4x16x128xf32>
    %81 = vector.broadcast %0 : vector<1x1x128xf32> to vector<4x16x128xf32>
    %82 = arith.mulf %80, %81 : vector<4x16x128xf32>
    %83 = vector.broadcast %1 : vector<1x1x128xf32> to vector<4x16x128xf32>
    %84 = arith.mulf %80, %83 : vector<4x16x128xf32>
    %85 = vector.broadcast %2 : vector<1x1x128xf32> to vector<4x16x128xf32>
    %86 = arith.mulf %80, %85 : vector<4x16x128xf32>
    %c0_60 = arith.constant 0 : index
    %c4 = arith.constant 4 : index
    %c0_61 = arith.constant 0 : index
    %c0_62 = arith.constant 0 : index
    %87 = vector.load %arg2[%c0_60, %c4, %c0_61, %c0_62] : memref<1x16x16x128xf32, #tpu.memory_space<vmem>>, vector<1x4x16x128xf32>
    %88 = vector.shape_cast %87 : vector<1x4x16x128xf32> to vector<4x16x128xf32>
    %89 = vector.broadcast %3 : vector<1x1x128xf32> to vector<4x16x128xf32>
    %90 = arith.mulf %88, %89 : vector<4x16x128xf32>
    %91 = arith.addf %82, %90 : vector<4x16x128xf32>
    %92 = vector.broadcast %4 : vector<1x1x128xf32> to vector<4x16x128xf32>
    %93 = arith.mulf %88, %92 : vector<4x16x128xf32>
    %94 = arith.addf %84, %93 : vector<4x16x128xf32>
    %95 = vector.broadcast %5 : vector<1x1x128xf32> to vector<4x16x128xf32>
    %96 = arith.mulf %88, %95 : vector<4x16x128xf32>
    %97 = arith.addf %86, %96 : vector<4x16x128xf32>
    %c0_63 = arith.constant 0 : index
    %c5 = arith.constant 5 : index
    %c0_64 = arith.constant 0 : index
    %c0_65 = arith.constant 0 : index
    %98 = vector.load %arg2[%c0_63, %c5, %c0_64, %c0_65] : memref<1x16x16x128xf32, #tpu.memory_space<vmem>>, vector<1x4x16x128xf32>
    %99 = vector.shape_cast %98 : vector<1x4x16x128xf32> to vector<4x16x128xf32>
    %100 = vector.broadcast %6 : vector<1x1x128xf32> to vector<4x16x128xf32>
    %101 = arith.mulf %99, %100 : vector<4x16x128xf32>
    %102 = arith.addf %91, %101 : vector<4x16x128xf32>
    %103 = vector.broadcast %7 : vector<1x1x128xf32> to vector<4x16x128xf32>
    %104 = arith.mulf %99, %103 : vector<4x16x128xf32>
    %105 = arith.addf %94, %104 : vector<4x16x128xf32>
    %106 = vector.broadcast %8 : vector<1x1x128xf32> to vector<4x16x128xf32>
    %107 = arith.mulf %99, %106 : vector<4x16x128xf32>
    %108 = arith.addf %97, %107 : vector<4x16x128xf32>
    %109 = tpu.iota {dimensions = array<i32: 1>} : vector<4x16x128xi32>
    %c1_i32_66 = arith.constant 1 : i32
    %110 = vector.broadcast %c1_i32_66 : i32 to vector<4x16x128xi32>
    %111 = arith.cmpi sge, %109, %110 : vector<4x16x128xi32>
    %c1_i32_67 = arith.constant 1 : i32
    %112 = tpu.dynamic_rotate %102 by %c1_i32_67 dim 1 : vector<4x16x128xf32>, i32 -> vector<4x16x128xf32>
    %cst_68 = arith.constant 0.000000e+00 : f32
    %113 = vector.broadcast %cst_68 : f32 to vector<4x16x128xf32>
    %114 = arith.select %111, %112, %113 : vector<4x16x128xi1>, vector<4x16x128xf32>
    %115 = arith.addf %105, %114 : vector<4x16x128xf32>
    %c14_i32_69 = arith.constant 14 : i32
    %116 = vector.broadcast %c14_i32_69 : i32 to vector<4x16x128xi32>
    %117 = arith.cmpi sle, %109, %116 : vector<4x16x128xi32>
    %c15_i32_70 = arith.constant 15 : i32
    %118 = tpu.dynamic_rotate %108 by %c15_i32_70 dim 1 : vector<4x16x128xf32>, i32 -> vector<4x16x128xf32>
    %cst_71 = arith.constant 0.000000e+00 : f32
    %119 = vector.broadcast %cst_71 : f32 to vector<4x16x128xf32>
    %120 = arith.select %117, %118, %119 : vector<4x16x128xi1>, vector<4x16x128xf32>
    %121 = arith.addf %115, %120 : vector<4x16x128xf32>
    %cst_72 = arith.constant 5.000000e-01 : f32
    %122 = vector.broadcast %cst_72 : f32 to vector<4x16x128xf32>
    %123 = arith.mulf %122, %121 : vector<4x16x128xf32>
    %124 = arith.mulf %121, %121 : vector<4x16x128xf32>
    %125 = arith.mulf %124, %121 : vector<4x16x128xf32>
    %cst_73 = arith.constant 4.471500e-02 : f32
    %126 = vector.broadcast %cst_73 : f32 to vector<4x16x128xf32>
    %127 = arith.mulf %126, %125 : vector<4x16x128xf32>
    %128 = arith.addf %121, %127 : vector<4x16x128xf32>
    %cst_74 = arith.constant 0.797884583 : f32
    %129 = vector.broadcast %cst_74 : f32 to vector<4x16x128xf32>
    %130 = arith.mulf %129, %128 : vector<4x16x128xf32>
    %131 = math.tanh %130 : vector<4x16x128xf32>
    %cst_75 = arith.constant 1.000000e+00 : f32
    %132 = vector.broadcast %cst_75 : f32 to vector<4x16x128xf32>
    %133 = arith.addf %132, %131 : vector<4x16x128xf32>
    %134 = arith.mulf %123, %133 : vector<4x16x128xf32>
    %c0_76 = arith.constant 0 : index
    %c4_77 = arith.constant 4 : index
    %c0_78 = arith.constant 0 : index
    %c0_79 = arith.constant 0 : index
    %135 = vector.load %arg2[%c0_76, %c4_77, %c0_78, %c0_79] : memref<1x16x16x128xf32, #tpu.memory_space<vmem>>, vector<1x4x16x128xf32>
    %136 = vector.shape_cast %135 : vector<1x4x16x128xf32> to vector<4x16x128xf32>
    %137 = vector.broadcast %9 : vector<1x1x128xf32> to vector<4x16x128xf32>
    %138 = arith.mulf %134, %137 : vector<4x16x128xf32>
    %139 = vector.broadcast %10 : vector<1x1x128xf32> to vector<4x16x128xf32>
    %140 = arith.addf %138, %139 : vector<4x16x128xf32>
    %141 = arith.addf %140, %136 : vector<4x16x128xf32>
    %c0_80 = arith.constant 0 : index
    %c4_81 = arith.constant 4 : index
    %c0_82 = arith.constant 0 : index
    %c0_83 = arith.constant 0 : index
    %142 = vector.load %arg6[%c0_80, %c4_81, %c0_82, %c0_83] : memref<1x16x16x128xf32, #tpu.memory_space<vmem>>, vector<1x4x16x128xf32>
    %143 = vector.shape_cast %142 : vector<1x4x16x128xf32> to vector<4x16x128xf32>
    %144 = vector.shape_cast %141 : vector<4x16x128xf32> to vector<1x4x16x128xf32>
    tpu.vector_store %arg6[%c0_80, %c4_81, %c0_82, %c0_83], %144 {strides = array<i32>} : memref<1x16x16x128xf32, #tpu.memory_space<vmem>>, vector<1x4x16x128xf32>,
    %c0_84 = arith.constant 0 : index
    %c7 = arith.constant 7 : index
    %c0_85 = arith.constant 0 : index
    %c0_86 = arith.constant 0 : index
    %145 = vector.load %arg2[%c0_84, %c7, %c0_85, %c0_86] : memref<1x16x16x128xf32, #tpu.memory_space<vmem>>, vector<1x4x16x128xf32>
    %146 = vector.shape_cast %145 : vector<1x4x16x128xf32> to vector<4x16x128xf32>
    %147 = vector.broadcast %0 : vector<1x1x128xf32> to vector<4x16x128xf32>
    %148 = arith.mulf %146, %147 : vector<4x16x128xf32>
    %149 = vector.broadcast %1 : vector<1x1x128xf32> to vector<4x16x128xf32>
    %150 = arith.mulf %146, %149 : vector<4x16x128xf32>
    %151 = vector.broadcast %2 : vector<1x1x128xf32> to vector<4x16x128xf32>
    %152 = arith.mulf %146, %151 : vector<4x16x128xf32>
    %c0_87 = arith.constant 0 : index
    %c8 = arith.constant 8 : index
    %c0_88 = arith.constant 0 : index
    %c0_89 = arith.constant 0 : index
    %153 = vector.load %arg2[%c0_87, %c8, %c0_88, %c0_89] : memref<1x16x16x128xf32, #tpu.memory_space<vmem>>, vector<1x4x16x128xf32>
    %154 = vector.shape_cast %153 : vector<1x4x16x128xf32> to vector<4x16x128xf32>
    %155 = vector.broadcast %3 : vector<1x1x128xf32> to vector<4x16x128xf32>
    %156 = arith.mulf %154, %155 : vector<4x16x128xf32>
    %157 = arith.addf %148, %156 : vector<4x16x128xf32>
    %158 = vector.broadcast %4 : vector<1x1x128xf32> to vector<4x16x128xf32>
    %159 = arith.mulf %154, %158 : vector<4x16x128xf32>
    %160 = arith.addf %150, %159 : vector<4x16x128xf32>
    %161 = vector.broadcast %5 : vector<1x1x128xf32> to vector<4x16x128xf32>
    %162 = arith.mulf %154, %161 : vector<4x16x128xf32>
    %163 = arith.addf %152, %162 : vector<4x16x128xf32>
    %c0_90 = arith.constant 0 : index
    %c9 = arith.constant 9 : index
    %c0_91 = arith.constant 0 : index
    %c0_92 = arith.constant 0 : index
    %164 = vector.load %arg2[%c0_90, %c9, %c0_91, %c0_92] : memref<1x16x16x128xf32, #tpu.memory_space<vmem>>, vector<1x4x16x128xf32>
    %165 = vector.shape_cast %164 : vector<1x4x16x128xf32> to vector<4x16x128xf32>
    %166 = vector.broadcast %6 : vector<1x1x128xf32> to vector<4x16x128xf32>
    %167 = arith.mulf %165, %166 : vector<4x16x128xf32>
    %168 = arith.addf %157, %167 : vector<4x16x128xf32>
    %169 = vector.broadcast %7 : vector<1x1x128xf32> to vector<4x16x128xf32>
    %170 = arith.mulf %165, %169 : vector<4x16x128xf32>
    %171 = arith.addf %160, %170 : vector<4x16x128xf32>
    %172 = vector.broadcast %8 : vector<1x1x128xf32> to vector<4x16x128xf32>
    %173 = arith.mulf %165, %172 : vector<4x16x128xf32>
    %174 = arith.addf %163, %173 : vector<4x16x128xf32>
    %175 = tpu.iota {dimensions = array<i32: 1>} : vector<4x16x128xi32>
    %c1_i32_93 = arith.constant 1 : i32
    %176 = vector.broadcast %c1_i32_93 : i32 to vector<4x16x128xi32>
    %177 = arith.cmpi sge, %175, %176 : vector<4x16x128xi32>
    %c1_i32_94 = arith.constant 1 : i32
    %178 = tpu.dynamic_rotate %168 by %c1_i32_94 dim 1 : vector<4x16x128xf32>, i32 -> vector<4x16x128xf32>
    %cst_95 = arith.constant 0.000000e+00 : f32
    %179 = vector.broadcast %cst_95 : f32 to vector<4x16x128xf32>
    %180 = arith.select %177, %178, %179 : vector<4x16x128xi1>, vector<4x16x128xf32>
    %181 = arith.addf %171, %180 : vector<4x16x128xf32>
    %c14_i32_96 = arith.constant 14 : i32
    %182 = vector.broadcast %c14_i32_96 : i32 to vector<4x16x128xi32>
    %183 = arith.cmpi sle, %175, %182 : vector<4x16x128xi32>
    %c15_i32_97 = arith.constant 15 : i32
    %184 = tpu.dynamic_rotate %174 by %c15_i32_97 dim 1 : vector<4x16x128xf32>, i32 -> vector<4x16x128xf32>
    %cst_98 = arith.constant 0.000000e+00 : f32
    %185 = vector.broadcast %cst_98 : f32 to vector<4x16x128xf32>
    %186 = arith.select %183, %184, %185 : vector<4x16x128xi1>, vector<4x16x128xf32>
    %187 = arith.addf %181, %186 : vector<4x16x128xf32>
    %cst_99 = arith.constant 5.000000e-01 : f32
    %188 = vector.broadcast %cst_99 : f32 to vector<4x16x128xf32>
    %189 = arith.mulf %188, %187 : vector<4x16x128xf32>
    %190 = arith.mulf %187, %187 : vector<4x16x128xf32>
    %191 = arith.mulf %190, %187 : vector<4x16x128xf32>
    %cst_100 = arith.constant 4.471500e-02 : f32
    %192 = vector.broadcast %cst_100 : f32 to vector<4x16x128xf32>
    %193 = arith.mulf %192, %191 : vector<4x16x128xf32>
    %194 = arith.addf %187, %193 : vector<4x16x128xf32>
    %cst_101 = arith.constant 0.797884583 : f32
    %195 = vector.broadcast %cst_101 : f32 to vector<4x16x128xf32>
    %196 = arith.mulf %195, %194 : vector<4x16x128xf32>
    %197 = math.tanh %196 : vector<4x16x128xf32>
    %cst_102 = arith.constant 1.000000e+00 : f32
    %198 = vector.broadcast %cst_102 : f32 to vector<4x16x128xf32>
    %199 = arith.addf %198, %197 : vector<4x16x128xf32>
    %200 = arith.mulf %189, %199 : vector<4x16x128xf32>
    %c0_103 = arith.constant 0 : index
    %c8_104 = arith.constant 8 : index
    %c0_105 = arith.constant 0 : index
    %c0_106 = arith.constant 0 : index
    %201 = vector.load %arg2[%c0_103, %c8_104, %c0_105, %c0_106] : memref<1x16x16x128xf32, #tpu.memory_space<vmem>>, vector<1x4x16x128xf32>
    %202 = vector.shape_cast %201 : vector<1x4x16x128xf32> to vector<4x16x128xf32>
    %203 = vector.broadcast %9 : vector<1x1x128xf32> to vector<4x16x128xf32>
    %204 = arith.mulf %200, %203 : vector<4x16x128xf32>
    %205 = vector.broadcast %10 : vector<1x1x128xf32> to vector<4x16x128xf32>
    %206 = arith.addf %204, %205 : vector<4x16x128xf32>
    %207 = arith.addf %206, %202 : vector<4x16x128xf32>
    %c0_107 = arith.constant 0 : index
    %c8_108 = arith.constant 8 : index
    %c0_109 = arith.constant 0 : index
    %c0_110 = arith.constant 0 : index
    %208 = vector.load %arg6[%c0_107, %c8_108, %c0_109, %c0_110] : memref<1x16x16x128xf32, #tpu.memory_space<vmem>>, vector<1x4x16x128xf32>
    %209 = vector.shape_cast %208 : vector<1x4x16x128xf32> to vector<4x16x128xf32>
    %210 = vector.shape_cast %207 : vector<4x16x128xf32> to vector<1x4x16x128xf32>
    tpu.vector_store %arg6[%c0_107, %c8_108, %c0_109, %c0_110], %210 {strides = array<i32>} : memref<1x16x16x128xf32, #tpu.memory_space<vmem>>, vector<1x4x16x128xf32>,
    %c0_111 = arith.constant 0 : index
    %c11 = arith.constant 11 : index
    %c0_112 = arith.constant 0 : index
    %c0_113 = arith.constant 0 : index
    %211 = vector.load %arg2[%c0_111, %c11, %c0_112, %c0_113] : memref<1x16x16x128xf32, #tpu.memory_space<vmem>>, vector<1x4x16x128xf32>
    %212 = vector.shape_cast %211 : vector<1x4x16x128xf32> to vector<4x16x128xf32>
    %213 = vector.broadcast %0 : vector<1x1x128xf32> to vector<4x16x128xf32>
    %214 = arith.mulf %212, %213 : vector<4x16x128xf32>
    %215 = vector.broadcast %1 : vector<1x1x128xf32> to vector<4x16x128xf32>
    %216 = arith.mulf %212, %215 : vector<4x16x128xf32>
    %217 = vector.broadcast %2 : vector<1x1x128xf32> to vector<4x16x128xf32>
    %218 = arith.mulf %212, %217 : vector<4x16x128xf32>
    %c0_114 = arith.constant 0 : index
    %c12 = arith.constant 12 : index
    %c0_115 = arith.constant 0 : index
    %c0_116 = arith.constant 0 : index
    %219 = vector.load %arg2[%c0_114, %c12, %c0_115, %c0_116] : memref<1x16x16x128xf32, #tpu.memory_space<vmem>>, vector<1x4x16x128xf32>
    %220 = vector.shape_cast %219 : vector<1x4x16x128xf32> to vector<4x16x128xf32>
    %221 = vector.broadcast %3 : vector<1x1x128xf32> to vector<4x16x128xf32>
    %222 = arith.mulf %220, %221 : vector<4x16x128xf32>
    %223 = arith.addf %214, %222 : vector<4x16x128xf32>
    %224 = vector.broadcast %4 : vector<1x1x128xf32> to vector<4x16x128xf32>
    %225 = arith.mulf %220, %224 : vector<4x16x128xf32>
    %226 = arith.addf %216, %225 : vector<4x16x128xf32>
    %227 = vector.broadcast %5 : vector<1x1x128xf32> to vector<4x16x128xf32>
    %228 = arith.mulf %220, %227 : vector<4x16x128xf32>
    %229 = arith.addf %218, %228 : vector<4x16x128xf32>
    %c0_117 = arith.constant 0 : index
    %c13 = arith.constant 13 : index
    %c0_118 = arith.constant 0 : index
    %c0_119 = arith.constant 0 : index
    %230 = vector.load %arg2[%c0_117, %c13, %c0_118, %c0_119] : memref<1x16x16x128xf32, #tpu.memory_space<vmem>>, vector<1x3x16x128xf32>
    %231 = vector.shape_cast %230 : vector<1x3x16x128xf32> to vector<3x16x128xf32>
    %cst_120 = arith.constant 0.000000e+00 : f32
    %232 = vector.broadcast %cst_120 : f32 to vector<1x16x128xf32>
    %233 = tpu.concatenate %231, %232 in 0 : vector<3x16x128xf32>, vector<1x16x128xf32> -> vector<4x16x128xf32>
    %234 = vector.broadcast %6 : vector<1x1x128xf32> to vector<4x16x128xf32>
    %235 = arith.mulf %233, %234 : vector<4x16x128xf32>
    %236 = arith.addf %223, %235 : vector<4x16x128xf32>
    %237 = vector.broadcast %7 : vector<1x1x128xf32> to vector<4x16x128xf32>
    %238 = arith.mulf %233, %237 : vector<4x16x128xf32>
    %239 = arith.addf %226, %238 : vector<4x16x128xf32>
    %240 = vector.broadcast %8 : vector<1x1x128xf32> to vector<4x16x128xf32>
    %241 = arith.mulf %233, %240 : vector<4x16x128xf32>
    %242 = arith.addf %229, %241 : vector<4x16x128xf32>
    %243 = tpu.iota {dimensions = array<i32: 1>} : vector<4x16x128xi32>
    %c1_i32_121 = arith.constant 1 : i32
    %244 = vector.broadcast %c1_i32_121 : i32 to vector<4x16x128xi32>
    %245 = arith.cmpi sge, %243, %244 : vector<4x16x128xi32>
    %c1_i32_122 = arith.constant 1 : i32
    %246 = tpu.dynamic_rotate %236 by %c1_i32_122 dim 1 : vector<4x16x128xf32>, i32 -> vector<4x16x128xf32>
    %cst_123 = arith.constant 0.000000e+00 : f32
    %247 = vector.broadcast %cst_123 : f32 to vector<4x16x128xf32>
    %248 = arith.select %245, %246, %247 : vector<4x16x128xi1>, vector<4x16x128xf32>
    %249 = arith.addf %239, %248 : vector<4x16x128xf32>
    %c14_i32_124 = arith.constant 14 : i32
    %250 = vector.broadcast %c14_i32_124 : i32 to vector<4x16x128xi32>
    %251 = arith.cmpi sle, %243, %250 : vector<4x16x128xi32>
    %c15_i32_125 = arith.constant 15 : i32
    %252 = tpu.dynamic_rotate %242 by %c15_i32_125 dim 1 : vector<4x16x128xf32>, i32 -> vector<4x16x128xf32>
    %cst_126 = arith.constant 0.000000e+00 : f32
    %253 = vector.broadcast %cst_126 : f32 to vector<4x16x128xf32>
    %254 = arith.select %251, %252, %253 : vector<4x16x128xi1>, vector<4x16x128xf32>
    %255 = arith.addf %249, %254 : vector<4x16x128xf32>
    %cst_127 = arith.constant 5.000000e-01 : f32
    %256 = vector.broadcast %cst_127 : f32 to vector<4x16x128xf32>
    %257 = arith.mulf %256, %255 : vector<4x16x128xf32>
    %258 = arith.mulf %255, %255 : vector<4x16x128xf32>
    %259 = arith.mulf %258, %255 : vector<4x16x128xf32>
    %cst_128 = arith.constant 4.471500e-02 : f32
    %260 = vector.broadcast %cst_128 : f32 to vector<4x16x128xf32>
    %261 = arith.mulf %260, %259 : vector<4x16x128xf32>
    %262 = arith.addf %255, %261 : vector<4x16x128xf32>
    %cst_129 = arith.constant 0.797884583 : f32
    %263 = vector.broadcast %cst_129 : f32 to vector<4x16x128xf32>
    %264 = arith.mulf %263, %262 : vector<4x16x128xf32>
    %265 = math.tanh %264 : vector<4x16x128xf32>
    %cst_130 = arith.constant 1.000000e+00 : f32
    %266 = vector.broadcast %cst_130 : f32 to vector<4x16x128xf32>
    %267 = arith.addf %266, %265 : vector<4x16x128xf32>
    %268 = arith.mulf %257, %267 : vector<4x16x128xf32>
    %c0_131 = arith.constant 0 : index
    %c12_132 = arith.constant 12 : index
    %c0_133 = arith.constant 0 : index
    %c0_134 = arith.constant 0 : index
    %269 = vector.load %arg2[%c0_131, %c12_132, %c0_133, %c0_134] : memref<1x16x16x128xf32, #tpu.memory_space<vmem>>, vector<1x4x16x128xf32>
    %270 = vector.shape_cast %269 : vector<1x4x16x128xf32> to vector<4x16x128xf32>
    %271 = vector.broadcast %9 : vector<1x1x128xf32> to vector<4x16x128xf32>
    %272 = arith.mulf %268, %271 : vector<4x16x128xf32>
    %273 = vector.broadcast %10 : vector<1x1x128xf32> to vector<4x16x128xf32>
    %274 = arith.addf %272, %273 : vector<4x16x128xf32>
    %275 = arith.addf %274, %270 : vector<4x16x128xf32>
    %c0_135 = arith.constant 0 : index
    %c12_136 = arith.constant 12 : index
    %c0_137 = arith.constant 0 : index
    %c0_138 = arith.constant 0 : index
    %276 = vector.load %arg6[%c0_135, %c12_136, %c0_137, %c0_138] : memref<1x16x16x128xf32, #tpu.memory_space<vmem>>, vector<1x4x16x128xf32>
    %277 = vector.shape_cast %276 : vector<1x4x16x128xf32> to vector<4x16x128xf32>
    %278 = vector.shape_cast %275 : vector<4x16x128xf32> to vector<1x4x16x128xf32>
    tpu.vector_store %arg6[%c0_135, %c12_136, %c0_137, %c0_138], %278 {strides = array<i32>} : memref<1x16x16x128xf32, #tpu.memory_space<vmem>>, vector<1x4x16x128xf32>,
    return
  }
  func.func @transform_0(%arg0: i32, %arg1: i32) -> (i32, i32, i32, i32) {
    %c0_i32 = arith.constant 0 : i32
    %c0_i32_0 = arith.constant 0 : i32
    %c0_i32_1 = arith.constant 0 : i32
    return %arg1, %c0_i32, %c0_i32_0, %arg0 : i32, i32, i32, i32
  }
  func.func @transform_1(%arg0: i32, %arg1: i32) -> (i32, i32, i32) {
    %c0_i32 = arith.constant 0 : i32
    %c0_i32_0 = arith.constant 0 : i32
    %c0_i32_1 = arith.constant 0 : i32
    return %c0_i32, %c0_i32_0, %arg0 : i32, i32, i32
  }
  func.func @transform_2(%arg0: i32, %arg1: i32) -> (i32, i32, i32) {
    %c0_i32 = arith.constant 0 : i32
    %c0_i32_0 = arith.constant 0 : i32
    %c0_i32_1 = arith.constant 0 : i32
    return %c0_i32, %c0_i32_0, %arg0 : i32, i32, i32
  }
  func.func @transform_3(%arg0: i32, %arg1: i32) -> (i32, i32, i32) {
    %c0_i32 = arith.constant 0 : i32
    %c0_i32_0 = arith.constant 0 : i32
    %c0_i32_1 = arith.constant 0 : i32
    return %c0_i32, %c0_i32_0, %arg0 : i32, i32, i32
  }
  func.func @transform_4(%arg0: i32, %arg1: i32) -> (i32, i32, i32, i32) {
    %c0_i32 = arith.constant 0 : i32
    %c0_i32_0 = arith.constant 0 : i32
    %c0_i32_1 = arith.constant 0 : i32
    return %arg1, %c0_i32, %c0_i32_0, %arg0 : i32, i32, i32, i32
  }
}

</mosaic_0001>

<llo_original>
// kernel: tpu_custom_call.1
$region0: #{tpu_custom_call.1}
  #allocation0 [shape = 'u32[]', space=smem, size = 0x4, offset = 0x4, fixed_abs, tag = 'smem constant byte address 0x4 - core index']
  #allocation1 [shape = 'u32[144,128]{1,0:T(1,128)}', space=vmem, size = 0x12000, scoped, tag = 'internal scratch']
  %s0 = inlined_call_operand.hbm [shape: f32[2,16,16,256], index: 0, kind: input, shape index: {}]
  %s1 = inlined_call_operand.hbm [shape: f32[3,3,256], index: 1, kind: input, shape index: {}]
  %s2 = inlined_call_operand.vmem [shape: f32[1,1,256], index: 2, kind: input, shape index: {}]
  %s3 = inlined_call_operand.vmem [shape: f32[1,1,256], index: 3, kind: input, shape index: {}]
  %s4 = inlined_call_operand.hbm [shape: f32[2,16,16,256], index: 4, kind: output, shape index: {}]
  %s5 = sld [smem:[#allocation0]]
  $region57: #{tpu_custom_call.1} parent=0
    _
  %s7 = ssub.s32 1, %s5
  %s8 = scalar_select 0, %s7, %s5
  $region1: #{tpu_custom_call.1} parent=0
    #allocation2 [shape = 'u8[262144]{0}', space=vmem, size = 0x40000, scoped, tag = 'input window, operand 0']
    #allocation3 [shape = 's32[2]{0}', space=sflag, size = 0x8, scoped, tag = 'scoped memory for tpu_custom_call.1']
    #allocation4 [shape = 's32[2]{0}', space=sflag, size = 0x8, scoped, tag = 'scoped memory for tpu_custom_call.1']
    #allocation5 [shape = 'u8[12288]{0}', space=vmem, size = 0x3000, scoped, tag = 'input window, operand 1']
    #allocation6 [shape = 's32[2]{0}', space=sflag, size = 0x8, scoped, tag = 'scoped memory for tpu_custom_call.1']
    #allocation7 [shape = 'u8[262144]{0}', space=vmem, size = 0x40000, scoped, tag = 'output window, operand 0']
    %9 = vsyncpa [#allocation3], 0
    %s10 = scalar_lea.sflag [#allocation3], 1
    %11 = vsyncpa %s10, 0
    %12 = vsyncpa [#allocation6], 0
    %s13 = scalar_lea.sflag [#allocation6], 1
    %14 = vsyncpa %s13, 0
    %15 = vsyncpa [#allocation4], 0
    %s16 = scalar_lea.sflag [#allocation4], 1
    %17 = vsyncpa %s16, 0
    loop: start=0, step=1, limit=6
    $region2: #{tpu_custom_call.1} parent=1 // loop_pre_header
      _
    $region3: #{tpu_custom_call.1} parent=1 // loop_header
      %s19 = sphi 0, %s23
      %p20 = scmp.ge.s32.totalorder %s19, 6
      %s26 = sphi 0, %s38
      %s27 = sphi 0, %s34
      %s28 = sphi 0, %s26
      %s29 = sphi 0, %s27
      %s30 = sphi 0, %s28
      %s31 = sphi 0, %s29
      %s43 = sphi 0, %s45
      %s46 = sphi 0, %s43
      %s47 = sphi 0, %s46
      %s63 = sphi 0, %s47
      %s69 = sphi 0, %s71
      %s72 = sphi 0, %s69
      %s73 = sphi 0, %s72
      %s89 = sphi 0, %s73
      %s95 = sphi 0, %s97
      %s98 = sphi 0, %s95
      %s99 = sphi 0, %s98
      %s115 = sphi 0, %s99
      %s121 = sphi 0, %s123
      %s124 = sphi 0, %s121
      %s125 = sphi 0, %s124
      %s141 = sphi 0, %s125
      %s149 = sphi 0, %s151
      %s152 = sphi 0, %s149
      %s153 = sphi 0, %s152
      %s169 = sphi 0, %s153
    $region4: #{tpu_custom_call.1} parent=1 // loop_header_branch
      %22 = sbr.rel (%p20) target = $region8
    $region5: #{tpu_custom_call.1} parent=1 // loop_body
      %s24 = ssub.s32 %s19, 1
      %s25 = ssub.s32 %s19, 2
      %s32 = sadd.s32 1, %s27
      %p33 = scmp.ge.s32.totalorder %s32, 2
      %s34 = scalar_select %p33, 0, %s32
      %s35 = sadd.s32 1, %s26
      %s36 = scalar_select %p33, %s35, %s26
      %p37 = scmp.ge.s32.totalorder %s36, 2
      %s38 = scalar_select %p37, 0, %s36
      %s39 = ssub.s32 %s27, %s34
      %s40 = ssub.s32 %s26, %s38
      %s41 = sor.u32 %s39, %s40
      %p42 = scmp.eq.s32.totalorder %s41, 0
      %s44 = sadd.s32 %s43, 1
      %s45 = scalar_select %p42, %s43, %s44
      %p48 = pneg %p42
      %p49 = scmp.eq.s32.totalorder %s19, 3
      %p50 = por %p48, %p49
      %p51 = scmp.ne.s32.totalorder %s43, %s46
      %p52 = scmp.eq.s32.totalorder %s19, 0
      %p53 = por %p51, %p52
      %p54 = scmp.ne.s32.totalorder %s43, %s46
      %p55 = scmp.eq.s32.totalorder %s24, 3
      %p56 = por %p54, %p55
      %p57 = scmp.ne.s32.totalorder %s46, %s47
      %p58 = scmp.eq.s32.totalorder %s24, 0
      %p59 = por %p57, %p58
      %p60 = scmp.ne.s32.totalorder %s46, %s47
      %p61 = scmp.eq.s32.totalorder %s25, 3
      %p62 = por %p60, %p61
      %p64 = scmp.ne.s32.totalorder %s47, %s63
      %p65 = scmp.eq.s32.totalorder %s25, 0
      %p66 = por %p64, %p65
      %s67 = ssub.s32 %s26, %s38
      %p68 = scmp.eq.s32.totalorder %s67, 0
      %s70 = sadd.s32 %s69, 1
      %s71 = scalar_select %p68, %s69, %s70
      %p74 = pneg %p68
      %p75 = scmp.eq.s32.totalorder %s19, 3
      %p76 = por %p74, %p75
      %p77 = scmp.ne.s32.totalorder %s69, %s72
      %p78 = scmp.eq.s32.totalorder %s19, 0
      %p79 = por %p77, %p78
      %p80 = scmp.ne.s32.totalorder %s69, %s72
      %p81 = scmp.eq.s32.totalorder %s24, 3
      %p82 = por %p80, %p81
      %p83 = scmp.ne.s32.totalorder %s72, %s73
      %p84 = scmp.eq.s32.totalorder %s24, 0
      %p85 = por %p83, %p84
      %p86 = scmp.ne.s32.totalorder %s72, %s73
      %p87 = scmp.eq.s32.totalorder %s25, 3
      %p88 = por %p86, %p87
      %p90 = scmp.ne.s32.totalorder %s73, %s89
      %p91 = scmp.eq.s32.totalorder %s25, 0
      %p92 = por %p90, %p91
      %s93 = ssub.s32 %s26, %s38
      %p94 = scmp.eq.s32.totalorder %s93, 0
      %s96 = sadd.s32 %s95, 1
      %s97 = scalar_select %p94, %s95, %s96
      %p100 = pneg %p94
      %p101 = scmp.eq.s32.totalorder %s19, 3
      %p102 = por %p100, %p101
      %p103 = scmp.ne.s32.totalorder %s95, %s98
      %p104 = scmp.eq.s32.totalorder %s19, 0
      %p105 = por %p103, %p104
      %p106 = scmp.ne.s32.totalorder %s95, %s98
      %p107 = scmp.eq.s32.totalorder %s24, 3
      %p108 = por %p106, %p107
      %p109 = scmp.ne.s32.totalorder %s98, %s99
      %p110 = scmp.eq.s32.totalorder %s24, 0
      %p111 = por %p109, %p110
      %p112 = scmp.ne.s32.totalorder %s98, %s99
      %p113 = scmp.eq.s32.totalorder %s25, 3
      %p114 = por %p112, %p113
      %p116 = scmp.ne.s32.totalorder %s99, %s115
      %p117 = scmp.eq.s32.totalorder %s25, 0
      %p118 = por %p116, %p117
      %s119 = ssub.s32 %s26, %s38
      %p120 = scmp.eq.s32.totalorder %s119, 0
      %s122 = sadd.s32 %s121, 1
      %s123 = scalar_select %p120, %s121, %s122
      %p126 = pneg %p120
      %p127 = scmp.eq.s32.totalorder %s19, 3
      %p128 = por %p126, %p127
      %p129 = scmp.ne.s32.totalorder %s121, %s124
      %p130 = scmp.eq.s32.totalorder %s19, 0
      %p131 = por %p129, %p130
      %p132 = scmp.ne.s32.totalorder %s121, %s124
      %p133 = scmp.eq.s32.totalorder %s24, 3
      %p134 = por %p132, %p133
      %p135 = scmp.ne.s32.totalorder %s124, %s125
      %p136 = scmp.eq.s32.totalorder %s24, 0
      %p137 = por %p135, %p136
      %p138 = scmp.ne.s32.totalorder %s124, %s125
      %p139 = scmp.eq.s32.totalorder %s25, 3
      %p140 = por %p138, %p139
      %p142 = scmp.ne.s32.totalorder %s125, %s141
      %p143 = scmp.eq.s32.totalorder %s25, 0
      %p144 = por %p142, %p143
      %s145 = ssub.s32 %s27, %s34
      %s146 = ssub.s32 %s26, %s38
      %s147 = sor.u32 %s145, %s146
      %p148 = scmp.eq.s32.totalorder %s147, 0
      %s150 = sadd.s32 %s149, 1
      %s151 = scalar_select %p148, %s149, %s150
      %p154 = pneg %p148
      %p155 = scmp.eq.s32.totalorder %s19, 3
      %p156 = por %p154, %p155
      %p157 = scmp.ne.s32.totalorder %s149, %s152
      %p158 = scmp.eq.s32.totalorder %s19, 0
      %p159 = por %p157, %p158
      %p160 = scmp.ne.s32.totalorder %s149, %s152
      %p161 = scmp.eq.s32.totalorder %s24, 3
      %p162 = por %p160, %p161
      %p163 = scmp.ne.s32.totalorder %s152, %s153
      %p164 = scmp.eq.s32.totalorder %s24, 0
      %p165 = por %p163, %p164
      %p166 = scmp.ne.s32.totalorder %s152, %s153
      %p167 = scmp.eq.s32.totalorder %s25, 3
      %p168 = por %p166, %p167
      %p170 = scmp.ne.s32.totalorder %s153, %s169
      %p171 = scmp.eq.s32.totalorder %s25, 0
      %p172 = por %p170, %p171
      %p173 = scmp.le.s32.totalorder 1, %s19
      %p174 = scmp.lt.s32.totalorder %s19, 5
      %p175 = pnand %p173, %p174
      %p176 = pneg %p175
      // Predicated region
      $region9: #{tpu_custom_call.1} parent=5 // pred_check
        _
      $region10: #{tpu_custom_call.1} parent=5 // pred_check_branch
        %178 = sbr.rel (%p175) target = $region12
      $region11: #{tpu_custom_call.1} parent=5 // pred_region
        %s179 = ssub.s32 %s19, 1
      $region12: #{tpu_custom_call.1} parent=5 // pred_fallthru
        _
      %p180 = scmp.lt.s32.totalorder %s19, 4
      // Predicated region
      $region13: #{tpu_custom_call.1} parent=5 // pred_check
        %p181 = pneg %p180
      $region14: #{tpu_custom_call.1} parent=5 // pred_check_branch
        %183 = sbr.rel (%p181) target = $region16
      $region15: #{tpu_custom_call.1} parent=5 // pred_region
        // Predicated region
        $region17: #{tpu_custom_call.1} parent=15 // pred_check
          %p184 = pneg %p53
        $region18: #{tpu_custom_call.1} parent=15 // pred_check_branch
          %186 = sbr.rel (%p184) target = $region20
        $region19: #{tpu_custom_call.1} parent=15 // pred_region
          %s187 = sand.u32 %s43, 1
          %s188 = scalar_lea.sflag [#allocation3], %s187
          %s189 = sand.u32 %s43, 1
          %s190 = smul.addr %s189, 256
          %s191 = scalar_lea.vmem [#allocation2], %s190
          %s193 = ssub.s32 4096, 4096
          %194 = vsyncadd %s188, %s193
          %s195 = smul.addr %s27, 64
          %s196 = sadd.s32 %s26, %s195
          %s197 = smul.addr %s196, 128
          %s198 = scalar_lea.hbm %s0, %s197
          %s199 = sshll.u32 %s191, 4
          %s200 = int_to_ptr.vmem [resolvable:$true] %s199
          %205 = dma.hbm_to_vmem [thread:$0]  %s198, 4096, %s200, %s188, 256, 128, 8
        $region20: #{tpu_custom_call.1} parent=15 // pred_fallthru
          _
        // Predicated region
        $region21: #{tpu_custom_call.1} parent=15 // pred_check
          %p206 = pneg %p79
        $region22: #{tpu_custom_call.1} parent=15 // pred_check_branch
          %208 = sbr.rel (%p206) target = $region24
        $region23: #{tpu_custom_call.1} parent=15 // pred_region
          %s209 = sand.u32 %s69, 1
          %s210 = scalar_lea.sflag [#allocation6], %s209
          %s211 = sand.u32 %s69, 1
          %s212 = smul.addr %s211, 12
          %s213 = scalar_lea.vmem [#allocation5], %s212
          %s215 = ssub.s32 192, 192
          %216 = vsyncadd %s210, %s215
          %s217 = smul.addr %s26, 64
          %s218 = scalar_lea.hbm %s1, %s217
          %s219 = sshll.u32 %s213, 4
          %s220 = int_to_ptr.vmem [resolvable:$true] %s219
          %225 = dma.hbm_to_vmem [thread:$0]  %s218, 192, %s220, %s210, 128, 64, 4
        $region24: #{tpu_custom_call.1} parent=15 // pred_fallthru
          _
        // Predicated region
        $region25: #{tpu_custom_call.1} parent=15 // pred_check
          %p226 = pneg %p105
        $region26: #{tpu_custom_call.1} parent=15 // pred_check_branch
          %228 = sbr.rel (%p226) target = $region28
        $region27: #{tpu_custom_call.1} parent=15 // pred_region
          %p229 = scmp.lt.s32.totalorder %s26, 1
          %s230 = scalar_select %p229, %s26, 1
          %s231 = scalar_lea.vmem %s2, %s230
        $region28: #{tpu_custom_call.1} parent=15 // pred_fallthru
          _
        // Predicated region
        $region29: #{tpu_custom_call.1} parent=15 // pred_check
          %p232 = pneg %p131
        $region30: #{tpu_custom_call.1} parent=15 // pred_check_branch
          %234 = sbr.rel (%p232) target = $region32
        $region31: #{tpu_custom_call.1} parent=15 // pred_region
          %p235 = scmp.lt.s32.totalorder %s26, 1
          %s236 = scalar_select %p235, %s26, 1
          %s237 = scalar_lea.vmem %s3, %s236
        $region32: #{tpu_custom_call.1} parent=15 // pred_fallthru
          _
      $region16: #{tpu_custom_call.1} parent=5 // pred_fallthru
        _
      %p238 = scmp.le.s32.totalorder 1, %s19
      %p239 = scmp.lt.s32.totalorder %s19, 5
      %p240 = pnand %p238, %p239
      %p241 = pneg %p240
      // Predicated region
      $region33: #{tpu_custom_call.1} parent=5 // pred_check
        _
      $region34: #{tpu_custom_call.1} parent=5 // pred_check_branch
        %243 = sbr.rel (%p240) target = $region36
      $region35: #{tpu_custom_call.1} parent=5 // pred_region
        %s244 = ssub.s32 %s19, 1
        %s245 = sand.u32 %s46, 1
        %s246 = scalar_lea.sflag [#allocation3], %s245
        %s247 = sand.u32 %s46, 1
        %s248 = smul.addr %s247, 256
        %s249 = scalar_lea.vmem [#allocation2], %s248
        // Predicated region
        $region37: #{tpu_custom_call.1} parent=35 // pred_check
          %p250 = pneg %p59
        $region38: #{tpu_custom_call.1} parent=35 // pred_check_branch
          %252 = sbr.rel (%p250) target = $region40
        $region39: #{tpu_custom_call.1} parent=35 // pred_region
          %253 = dma.done %s246, 4096
        $region40: #{tpu_custom_call.1} parent=35 // pred_fallthru
          _
        %s254 = sand.u32 %s72, 1
        %s255 = scalar_lea.sflag [#allocation6], %s254
        %s256 = sand.u32 %s72, 1
        %s257 = smul.addr %s256, 12
        %s258 = scalar_lea.vmem [#allocation5], %s257
        // Predicated region
        $region41: #{tpu_custom_call.1} parent=35 // pred_check
          %p259 = pneg %p85
        $region42: #{tpu_custom_call.1} parent=35 // pred_check_branch
          %261 = sbr.rel (%p259) target = $region44
        $region43: #{tpu_custom_call.1} parent=35 // pred_region
          %262 = dma.done %s255, 192
        $region44: #{tpu_custom_call.1} parent=35 // pred_fallthru
          _
        %s263 = sand.u32 %s46, 1
        %s264 = scalar_lea.sflag [#allocation3], %s263
        %s265 = sand.u32 %s46, 1
        %s266 = smul.addr %s265, 256
        %s267 = scalar_lea.vmem [#allocation2], %s266
        %p268 = pneg %p59
        %p269 = pneg %p56
        %s270 = sand.u32 %s72, 1
        %s271 = scalar_lea.sflag [#allocation6], %s270
        %s272 = sand.u32 %s72, 1
        %s273 = smul.addr %s272, 12
        %s274 = scalar_lea.vmem [#allocation5], %s273
        %p275 = pneg %p85
        %p276 = pneg %p82
        %p277 = scmp.lt.s32.totalorder %s28, 1
        %s278 = scalar_select %p277, %s28, 1
        %s279 = scalar_lea.vmem %s2, %s278
        %p280 = pneg %p111
        %p281 = pneg %p108
        %p282 = scmp.lt.s32.totalorder %s28, 1
        %s283 = scalar_select %p282, %s28, 1
        %s284 = scalar_lea.vmem %s3, %s283
        %p285 = pneg %p137
        %p286 = pneg %p134
        %p287 = pneg %p165
        %p288 = pneg %p162
        %s289 = sand.u32 %s152, 1
        %s290 = scalar_lea.sflag [#allocation4], %s289
        %s291 = sand.u32 %s152, 1
        %s292 = smul.addr %s291, 256
        %s293 = scalar_lea.vmem [#allocation7], %s292
        %p294 = scmp.lt.s32.totalorder %s28, 1
        %s295 = scalar_select %p294, %s28, 1
        %s296 = scalar_lea.vmem %s2, %s295
        %p297 = scmp.lt.s32.totalorder %s28, 1
        %s298 = scalar_select %p297, %s28, 1
        %s299 = scalar_lea.vmem %s3, %s298
        %v300 = vld [vmem:[%s258] sm:$0x1]
        %v301 = vld [vmem:[%s258 + $0x1] sm:$0x1]
        %v302 = vld [vmem:[%s258 + $0x2] sm:$0x1]
        %s303 = scalar_lea.vmem %s258, 4 [#allocation5]
        %v304 = vld [vmem:[%s303] sm:$0x1]
        %v305 = vld [vmem:[%s303 + $0x1] sm:$0x1]
        %v306 = vld [vmem:[%s303 + $0x2] sm:$0x1]
        %s307 = scalar_lea.vmem %s258, 8 [#allocation5]
        %v308 = vld [vmem:[%s307] sm:$0x1]
        %v309 = vld [vmem:[%s307 + $0x1] sm:$0x1]
        %v310 = vld [vmem:[%s307 + $0x2] sm:$0x1]
        %v311 = vld [vmem:[%s296] sm:$0x1]
        %v312 = vld [vmem:[%s299] sm:$0x1]
        %v313 = vld [vmem:[%s249] sm:$0xff]
        %v314 = vld [vmem:[%s249 + $0x8] sm:$0xff]
        %v315 = vld [vmem:[%s249 + $0x10] sm:$0xff]
        %v316 = vld [vmem:[%s249 + $0x18] sm:$0xff]
        %v317 = vld [vmem:[%s249 + $0x20] sm:$0xff]
        %v318 = vld [vmem:[%s249 + $0x28] sm:$0xff]
        %v319 = vlaneseq
        %v320 = vshrl.u32 %v319, 7
        %v321 = vsub.s32 0, %v320
        %v322 = vrot.slane %v300, %v321
        %v323 = vmul.f32 %v322, 0.0
        %v324 = vmul.f32 %v313, %v322
        %v325 = vmul.f32 %v314, %v322
        %v326 = vmul.f32 %v315, %v322
        %v327 = vmul.f32 %v316, %v322
        %v328 = vmul.f32 %v317, %v322
        %v329 = vmul.f32 %v318, %v322
        %v330 = vlaneseq
        %v331 = vshrl.u32 %v330, 7
        %v332 = vsub.s32 0, %v331
        %v333 = vrot.slane %v301, %v332
        %v334 = vmul.f32 %v333, 0.0
        %v335 = vmul.f32 %v313, %v333
        %v336 = vmul.f32 %v314, %v333
        %v337 = vmul.f32 %v315, %v333
        %v338 = vmul.f32 %v316, %v333
        %v339 = vmul.f32 %v317, %v333
        %v340 = vmul.f32 %v318, %v333
        %v341 = vlaneseq
        %v342 = vshrl.u32 %v341, 7
        %v343 = vsub.s32 0, %v342
        %v344 = vrot.slane %v302, %v343
        %v345 = vmul.f32 %v344, 0.0
        %v346 = vmul.f32 %v313, %v344
        %v347 = vmul.f32 %v314, %v344
        %v348 = vmul.f32 %v315, %v344
        %v349 = vmul.f32 %v316, %v344
        %v350 = vmul.f32 %v317, %v344
        %v351 = vmul.f32 %v318, %v344
        %v352 = vld [vmem:[%s249 + $0x30] sm:$0xff]
        %v353 = vld [vmem:[%s249 + $0x38] sm:$0xff]
        %v354 = vlaneseq
        %v355 = vshrl.u32 %v354, 7
        %v356 = vsub.s32 0, %v355
        %v357 = vrot.slane %v304, %v356
        %v358 = vmul.f32 %v313, %v357
        %v359 = vmul.f32 %v314, %v357
        %v360 = vmul.f32 %v315, %v357
        %v361 = vmul.f32 %v316, %v357
        %v362 = vmul.f32 %v317, %v357
        %v363 = vmul.f32 %v318, %v357
        %v364 = vmul.f32 %v352, %v357
        %v365 = vmul.f32 %v353, %v357
        %v366 = vadd.f32 %v323, %v358
        %v367 = vadd.f32 %v323, %v359
        %v368 = vadd.f32 %v324, %v360
        %v369 = vadd.f32 %v325, %v361
        %v370 = vadd.f32 %v326, %v362
        %v371 = vadd.f32 %v327, %v363
        %v372 = vadd.f32 %v328, %v364
        %v373 = vadd.f32 %v329, %v365
        %v374 = vlaneseq
        %v375 = vshrl.u32 %v374, 7
        %v376 = vsub.s32 0, %v375
        %v377 = vrot.slane %v305, %v376
        %v378 = vmul.f32 %v313, %v377
        %v379 = vmul.f32 %v314, %v377
        %v380 = vmul.f32 %v315, %v377
        %v381 = vmul.f32 %v316, %v377
        %v382 = vmul.f32 %v317, %v377
        %v383 = vmul.f32 %v318, %v377
        %v384 = vmul.f32 %v352, %v377
        %v385 = vmul.f32 %v353, %v377
        %v386 = vadd.f32 %v334, %v378
        %v387 = vadd.f32 %v334, %v379
        %v388 = vadd.f32 %v335, %v380
        %v389 = vadd.f32 %v336, %v381
        %v390 = vadd.f32 %v337, %v382
        %v391 = vadd.f32 %v338, %v383
        %v392 = vadd.f32 %v339, %v384
        %v393 = vadd.f32 %v340, %v385
        %v394 = vlaneseq
        %v395 = vshrl.u32 %v394, 7
        %v396 = vsub.s32 0, %v395
        %v397 = vrot.slane %v306, %v396
        %v398 = vmul.f32 %v313, %v397
        %v399 = vmul.f32 %v314, %v397
        %v400 = vmul.f32 %v315, %v397
        %v401 = vmul.f32 %v316, %v397
        %v402 = vmul.f32 %v317, %v397
        %v403 = vmul.f32 %v318, %v397
        %v404 = vmul.f32 %v352, %v397
        %v405 = vmul.f32 %v353, %v397
        %v406 = vadd.f32 %v345, %v398
        %v407 = vadd.f32 %v345, %v399
        %v408 = vadd.f32 %v346, %v400
        %v409 = vadd.f32 %v347, %v401
        %v410 = vadd.f32 %v348, %v402
        %v411 = vadd.f32 %v349, %v403
        %v412 = vadd.f32 %v350, %v404
        %v413 = vadd.f32 %v351, %v405
        %s414 = scalar_lea.vmem %s249, 16 [#allocation2]
        %v415 = vld [vmem:[%s414] sm:$0xff]
        %v416 = vld [vmem:[%s414 + $0x8] sm:$0xff]
        %v417 = vld [vmem:[%s414 + $0x10] sm:$0xff]
        %v418 = vld [vmem:[%s414 + $0x18] sm:$0xff]
        %v419 = vld [vmem:[%s414 + $0x20] sm:$0xff]
        %v420 = vld [vmem:[%s414 + $0x28] sm:$0xff]
        %v421 = vld [vmem:[%s414 + $0x30] sm:$0xff]
        %v422 = vld [vmem:[%s414 + $0x38] sm:$0xff]
        %v423 = vlaneseq
        %v424 = vshrl.u32 %v423, 7
        %v425 = vsub.s32 0, %v424
        %v426 = vrot.slane %v308, %v425
        %v427 = vmul.f32 %v415, %v426
        %v428 = vmul.f32 %v416, %v426
        %v429 = vmul.f32 %v417, %v426
        %v430 = vmul.f32 %v418, %v426
        %v431 = vmul.f32 %v419, %v426
        %v432 = vmul.f32 %v420, %v426
        %v433 = vmul.f32 %v421, %v426
        %v434 = vmul.f32 %v422, %v426
        %v435 = vadd.f32 %v366, %v427
        %v436 = vadd.f32 %v367, %v428
        %v437 = vadd.f32 %v368, %v429
        %v438 = vadd.f32 %v369, %v430
        %v439 = vadd.f32 %v370, %v431
        %v440 = vadd.f32 %v371, %v432
        %v441 = vadd.f32 %v372, %v433
        %v442 = vadd.f32 %v373, %v434
        %v443 = vlaneseq
        %v444 = vshrl.u32 %v443, 7
        %v445 = vsub.s32 0, %v444
        %v446 = vrot.slane %v309, %v445
        %v447 = vmul.f32 %v415, %v446
        %v448 = vmul.f32 %v416, %v446
        %v449 = vmul.f32 %v417, %v446
        %v450 = vmul.f32 %v418, %v446
        %v451 = vmul.f32 %v419, %v446
        %v452 = vmul.f32 %v420, %v446
        %v453 = vmul.f32 %v421, %v446
        %v454 = vmul.f32 %v422, %v446
        %v455 = vadd.f32 %v386, %v447
        %v456 = vadd.f32 %v387, %v448
        %v457 = vadd.f32 %v388, %v449
        %v458 = vadd.f32 %v389, %v450
        %v459 = vadd.f32 %v390, %v451
        %v460 = vadd.f32 %v391, %v452
        %v461 = vadd.f32 %v392, %v453
        %v462 = vadd.f32 %v393, %v454
        %v463 = vlaneseq
        %v464 = vshrl.u32 %v463, 7
        %v465 = vsub.s32 0, %v464
        %v466 = vrot.slane %v310, %v465
        %v467 = vmul.f32 %v415, %v466
        %v468 = vmul.f32 %v416, %v466
        %v469 = vmul.f32 %v417, %v466
        %v470 = vmul.f32 %v418, %v466
        %v471 = vmul.f32 %v419, %v466
        %v472 = vmul.f32 %v420, %v466
        %v473 = vmul.f32 %v421, %v466
        %v474 = vmul.f32 %v422, %v466
        %v475 = vadd.f32 %v406, %v467
        %v476 = vadd.f32 %v407, %v468
        %v477 = vadd.f32 %v408, %v469
        %v478 = vadd.f32 %v409, %v470
        %v479 = vadd.f32 %v410, %v471
        %v480 = vadd.f32 %v411, %v472
        %v481 = vadd.f32 %v412, %v473
        %v482 = vadd.f32 %v413, %v474
        %v483 = vlaneseq
        %v484 = vshrl.u32 %v483, 7
        %v485 = vadd.s32 %v484, 8
        %vm486 = vcmp.ge.s32.totalorder %v484, 1
        %vm487 = vcmp.ge.s32.totalorder %v485, 1
        %v488 = vrot.slane %v435, 7
        %v489 = vrot.slane %v437, 7
        %v490 = vrot.slane %v439, 7
        %v491 = vrot.slane %v441, 7
        %v492 = vrot.slane %v436, 7
        %v493 = vrot.slane %v438, 7
        %v494 = vrot.slane %v440, 7
        %v495 = vrot.slane %v442, 7
        %vm496 = vcmp.lt.s32.totalorder %v484, 1
        %v497 = vsel %vm496, %v488, %v492
        %v498 = vsel %vm496, %v489, %v493
        %v499 = vsel %vm496, %v490, %v494
        %v500 = vsel %vm496, %v491, %v495
        %v501 = vsel %vm496, %v492, %v488
        %v502 = vsel %vm496, %v493, %v489
        %v503 = vsel %vm496, %v494, %v490
        %v504 = vsel %vm496, %v495, %v491
        %v505 = vsel %vm486, %v501, 0.0
        %v506 = vsel %vm487, %v497, 0.0
        %v507 = vsel %vm486, %v502, 0.0
        %v508 = vsel %vm487, %v498, 0.0
        %v509 = vsel %vm486, %v503, 0.0
        %v510 = vsel %vm487, %v499, 0.0
        %v511 = vsel %vm486, %v504, 0.0
        %v512 = vsel %vm487, %v500, 0.0
        %v513 = vadd.f32 %v455, %v505
        %v514 = vadd.f32 %v456, %v506
        %v515 = vadd.f32 %v457, %v507
        %v516 = vadd.f32 %v458, %v508
        %v517 = vadd.f32 %v459, %v509
        %v518 = vadd.f32 %v460, %v510
        %v519 = vadd.f32 %v461, %v511
        %v520 = vadd.f32 %v462, %v512
        %vm521 = vcmp.le.s32.totalorder %v484, 14
        %vm522 = vcmp.le.s32.totalorder %v485, 14
        %v523 = vrot.slane %v475, 1
        %v524 = vrot.slane %v477, 1
        %v525 = vrot.slane %v479, 1
        %v526 = vrot.slane %v481, 1
        %v527 = vrot.slane %v476, 1
        %v528 = vrot.slane %v478, 1
        %v529 = vrot.slane %v480, 1
        %v530 = vrot.slane %v482, 1
        %vm531 = vcmp.lt.s32.totalorder %v484, 7
        %v532 = vsel %vm531, %v523, %v527
        %v533 = vsel %vm531, %v524, %v528
        %v534 = vsel %vm531, %v525, %v529
        %v535 = vsel %vm531, %v526, %v530
        %v536 = vsel %vm531, %v527, %v523
        %v537 = vsel %vm531, %v528, %v524
        %v538 = vsel %vm531, %v529, %v525
        %v539 = vsel %vm531, %v530, %v526
        %v540 = vsel %vm521, %v532, 0.0
        %v541 = vsel %vm522, %v536, 0.0
        %v542 = vsel %vm521, %v533, 0.0
        %v543 = vsel %vm522, %v537, 0.0
        %v544 = vsel %vm521, %v534, 0.0
        %v545 = vsel %vm522, %v538, 0.0
        %v546 = vsel %vm521, %v535, 0.0
        %v547 = vsel %vm522, %v539, 0.0
        %v548 = vadd.f32 %v513, %v540
        %v549 = vadd.f32 %v514, %v541
        %v550 = vadd.f32 %v515, %v542
        %v551 = vadd.f32 %v516, %v543
        %v552 = vadd.f32 %v517, %v544
        %v553 = vadd.f32 %v518, %v545
        %v554 = vadd.f32 %v519, %v546
        %v555 = vadd.f32 %v520, %v547
        %v556 = vmul.f32 %v548, 0.5
        %v557 = vmul.f32 %v549, 0.5
        %v558 = vmul.f32 %v550, 0.5
        %v559 = vmul.f32 %v551, 0.5
        %v560 = vmul.f32 %v552, 0.5
        %v561 = vmul.f32 %v553, 0.5
        %v562 = vmul.f32 %v554, 0.5
        %v563 = vmul.f32 %v555, 0.5
        %v564 = vmul.f32 %v548, %v548
        %v565 = vmul.f32 %v549, %v549
        %v566 = vmul.f32 %v550, %v550
        %v567 = vmul.f32 %v551, %v551
        %v568 = vmul.f32 %v552, %v552
        %v569 = vmul.f32 %v553, %v553
        %v570 = vmul.f32 %v554, %v554
        %v571 = vmul.f32 %v555, %v555
        %v572 = vmul.f32 %v564, %v548
        %v573 = vmul.f32 %v565, %v549
        %v574 = vmul.f32 %v566, %v550
        %v575 = vmul.f32 %v567, %v551
        %v576 = vmul.f32 %v568, %v552
        %v577 = vmul.f32 %v569, %v553
        %v578 = vmul.f32 %v570, %v554
        %v579 = vmul.f32 %v571, %v555
        %v580 = vmul.f32 %v572, 0.044715
        %v581 = vmul.f32 %v573, 0.044715
        %v582 = vmul.f32 %v574, 0.044715
        %v583 = vmul.f32 %v575, 0.044715
        %v584 = vmul.f32 %v576, 0.044715
        %v585 = vmul.f32 %v577, 0.044715
        %v586 = vmul.f32 %v578, 0.044715
        %v587 = vmul.f32 %v579, 0.044715
        %v588 = vadd.f32 %v548, %v580
        %v589 = vadd.f32 %v549, %v581
        %v590 = vadd.f32 %v550, %v582
        %v591 = vadd.f32 %v551, %v583
        %v592 = vadd.f32 %v552, %v584
        %v593 = vadd.f32 %v553, %v585
        %v594 = vadd.f32 %v554, %v586
        %v595 = vadd.f32 %v555, %v587
        %v596 = vmul.f32 %v588, 0.7978846
        %v597 = vmul.f32 %v589, 0.7978846
        %v598 = vmul.f32 %v590, 0.7978846
        %v599 = vmul.f32 %v591, 0.7978846
        %v600 = vmul.f32 %v592, 0.7978846
        %v601 = vmul.f32 %v593, 0.7978846
        %v602 = vmul.f32 %v594, 0.7978846
        %v603 = vmul.f32 %v595, 0.7978846
        %v604 = vtanh.pop %v596
        %v605 = vtanh.pop %v597
        %v606 = vtanh.pop %v598
        %v607 = vtanh.pop %v599
        %v608 = vtanh.pop %v600
        %v609 = vtanh.pop %v601
        %v610 = vtanh.pop %v602
        %v611 = vtanh.pop %v603
        %v612 = vadd.f32 %v604, 1.0
        %v613 = vadd.f32 %v605, 1.0
        %v614 = vadd.f32 %v606, 1.0
        %v615 = vadd.f32 %v607, 1.0
        %v616 = vadd.f32 %v608, 1.0
        %v617 = vadd.f32 %v609, 1.0
        %v618 = vadd.f32 %v610, 1.0
        %v619 = vadd.f32 %v611, 1.0
        %v620 = vmul.f32 %v556, %v612
        %v621 = vmul.f32 %v557, %v613
        %v622 = vmul.f32 %v558, %v614
        %v623 = vmul.f32 %v559, %v615
        %v624 = vmul.f32 %v560, %v616
        %v625 = vmul.f32 %v561, %v617
        %v626 = vmul.f32 %v562, %v618
        %v627 = vmul.f32 %v563, %v619
        %v629 = vlaneseq
        %v630 = vshrl.u32 %v629, 7
        %v631 = vsub.s32 0, %v630
        %v632 = vrot.slane %v311, %v631
        %v634 = vmul.f32 %v620, %v632
        %v635 = vmul.f32 %v621, %v632
        %v636 = vmul.f32 %v622, %v632
        %v637 = vmul.f32 %v623, %v632
        %v638 = vmul.f32 %v624, %v632
        %v639 = vmul.f32 %v625, %v632
        %v640 = vmul.f32 %v626, %v632
        %v641 = vmul.f32 %v627, %v632
        %v643 = vlaneseq
        %v644 = vshrl.u32 %v643, 7
        %v645 = vsub.s32 0, %v644
        %v646 = vrot.slane %v312, %v645
        %v648 = vadd.f32 %v634, %v646
        %v649 = vadd.f32 %v635, %v646
        %v650 = vadd.f32 %v636, %v646
        %v651 = vadd.f32 %v637, %v646
        %v652 = vadd.f32 %v638, %v646
        %v653 = vadd.f32 %v639, %v646
        %v654 = vadd.f32 %v640, %v646
        %v655 = vadd.f32 %v641, %v646
        %v656 = vadd.f32 %v648, %v313
        %v657 = vadd.f32 %v649, %v314
        %v658 = vadd.f32 %v650, %v315
        %v659 = vadd.f32 %v651, %v316
        %v660 = vadd.f32 %v652, %v317
        %v661 = vadd.f32 %v653, %v318
        %v662 = vadd.f32 %v654, %v352
        %v663 = vadd.f32 %v655, %v353
        %664 = vst [vmem:[%s293] sm:$0xff] %v656
        %665 = vst [vmem:[%s293 + $0x8] sm:$0xff] %v657
        %666 = vst [vmem:[%s293 + $0x10] sm:$0xff] %v658
        %667 = vst [vmem:[%s293 + $0x18] sm:$0xff] %v659
        %668 = vst [vmem:[%s293 + $0x20] sm:$0xff] %v660
        %669 = vst [vmem:[%s293 + $0x28] sm:$0xff] %v661
        %670 = vst [vmem:[%s293 + $0x30] sm:$0xff] %v662
        %671 = vst [vmem:[%s293 + $0x38] sm:$0xff] %v663
        %s672 = scalar_lea.vmem %s249, 48 [#allocation2]
        %v673 = vld [vmem:[%s672] sm:$0xff]
        %v674 = vld [vmem:[%s672 + $0x8] sm:$0xff]
        %v675 = vld [vmem:[%s672 + $0x10] sm:$0xff]
        %v676 = vld [vmem:[%s672 + $0x18] sm:$0xff]
        %v677 = vld [vmem:[%s672 + $0x20] sm:$0xff]
        %v678 = vld [vmem:[%s672 + $0x28] sm:$0xff]
        %v679 = vld [vmem:[%s672 + $0x30] sm:$0xff]
        %v680 = vld [vmem:[%s672 + $0x38] sm:$0xff]
        %v681 = vmul.f32 %v673, %v322
        %v682 = vmul.f32 %v674, %v322
        %v683 = vmul.f32 %v675, %v322
        %v684 = vmul.f32 %v676, %v322
        %v685 = vmul.f32 %v677, %v322
        %v686 = vmul.f32 %v678, %v322
        %v687 = vmul.f32 %v679, %v322
        %v688 = vmul.f32 %v680, %v322
        %v689 = vmul.f32 %v673, %v333
        %v690 = vmul.f32 %v674, %v333
        %v691 = vmul.f32 %v675, %v333
        %v692 = vmul.f32 %v676, %v333
        %v693 = vmul.f32 %v677, %v333
        %v694 = vmul.f32 %v678, %v333
        %v695 = vmul.f32 %v679, %v333
        %v696 = vmul.f32 %v680, %v333
        %v697 = vmul.f32 %v673, %v344
        %v698 = vmul.f32 %v674, %v344
        %v699 = vmul.f32 %v675, %v344
        %v700 = vmul.f32 %v676, %v344
        %v701 = vmul.f32 %v677, %v344
        %v702 = vmul.f32 %v678, %v344
        %v703 = vmul.f32 %v679, %v344
        %v704 = vmul.f32 %v680, %v344
        %s705 = scalar_lea.vmem %s249, 64 [#allocation2]
        %v706 = vld [vmem:[%s705] sm:$0xff]
        %v707 = vld [vmem:[%s705 + $0x8] sm:$0xff]
        %v708 = vld [vmem:[%s705 + $0x10] sm:$0xff]
        %v709 = vld [vmem:[%s705 + $0x18] sm:$0xff]
        %v710 = vld [vmem:[%s705 + $0x20] sm:$0xff]
        %v711 = vld [vmem:[%s705 + $0x28] sm:$0xff]
        %v712 = vld [vmem:[%s705 + $0x30] sm:$0xff]
        %v713 = vld [vmem:[%s705 + $0x38] sm:$0xff]
        %v714 = vmul.f32 %v706, %v357
        %v715 = vmul.f32 %v707, %v357
        %v716 = vmul.f32 %v708, %v357
        %v717 = vmul.f32 %v709, %v357
        %v718 = vmul.f32 %v710, %v357
        %v719 = vmul.f32 %v711, %v357
        %v720 = vmul.f32 %v712, %v357
        %v721 = vmul.f32 %v713, %v357
        %v722 = vadd.f32 %v681, %v714
        %v723 = vadd.f32 %v682, %v715
        %v724 = vadd.f32 %v683, %v716
        %v725 = vadd.f32 %v684, %v717
        %v726 = vadd.f32 %v685, %v718
        %v727 = vadd.f32 %v686, %v719
        %v728 = vadd.f32 %v687, %v720
        %v729 = vadd.f32 %v688, %v721
        %v730 = vmul.f32 %v706, %v377
        %v731 = vmul.f32 %v707, %v377
        %v732 = vmul.f32 %v708, %v377
        %v733 = vmul.f32 %v709, %v377
        %v734 = vmul.f32 %v710, %v377
        %v735 = vmul.f32 %v711, %v377
        %v736 = vmul.f32 %v712, %v377
        %v737 = vmul.f32 %v713, %v377
        %v738 = vadd.f32 %v689, %v730
        %v739 = vadd.f32 %v690, %v731
        %v740 = vadd.f32 %v691, %v732
        %v741 = vadd.f32 %v692, %v733
        %v742 = vadd.f32 %v693, %v734
        %v743 = vadd.f32 %v694, %v735
        %v744 = vadd.f32 %v695, %v736
        %v745 = vadd.f32 %v696, %v737
        %v746 = vmul.f32 %v706, %v397
        %v747 = vmul.f32 %v707, %v397
        %v748 = vmul.f32 %v708, %v397
        %v749 = vmul.f32 %v709, %v397
        %v750 = vmul.f32 %v710, %v397
        %v751 = vmul.f32 %v711, %v397
        %v752 = vmul.f32 %v712, %v397
        %v753 = vmul.f32 %v713, %v397
        %v754 = vadd.f32 %v697, %v746
        %v755 = vadd.f32 %v698, %v747
        %v756 = vadd.f32 %v699, %v748
        %v757 = vadd.f32 %v700, %v749
        %v758 = vadd.f32 %v701, %v750
        %v759 = vadd.f32 %v702, %v751
        %v760 = vadd.f32 %v703, %v752
        %v761 = vadd.f32 %v704, %v753
        %s762 = scalar_lea.vmem %s249, 80 [#allocation2]
        %v763 = vld [vmem:[%s762] sm:$0xff]
        %v764 = vld [vmem:[%s762 + $0x8] sm:$0xff]
        %v765 = vld [vmem:[%s762 + $0x10] sm:$0xff]
        %v766 = vld [vmem:[%s762 + $0x18] sm:$0xff]
        %v767 = vld [vmem:[%s762 + $0x20] sm:$0xff]
        %v768 = vld [vmem:[%s762 + $0x28] sm:$0xff]
        %v769 = vld [vmem:[%s762 + $0x30] sm:$0xff]
        %v770 = vld [vmem:[%s762 + $0x38] sm:$0xff]
        %v771 = vmul.f32 %v763, %v426
        %v772 = vmul.f32 %v764, %v426
        %v773 = vmul.f32 %v765, %v426
        %v774 = vmul.f32 %v766, %v426
        %v775 = vmul.f32 %v767, %v426
        %v776 = vmul.f32 %v768, %v426
        %v777 = vmul.f32 %v769, %v426
        %v778 = vmul.f32 %v770, %v426
        %v779 = vadd.f32 %v722, %v771
        %v780 = vadd.f32 %v723, %v772
        %v781 = vadd.f32 %v724, %v773
        %v782 = vadd.f32 %v725, %v774
        %v783 = vadd.f32 %v726, %v775
        %v784 = vadd.f32 %v727, %v776
        %v785 = vadd.f32 %v728, %v777
        %v786 = vadd.f32 %v729, %v778
        %v787 = vmul.f32 %v763, %v446
        %v788 = vmul.f32 %v764, %v446
        %v789 = vmul.f32 %v765, %v446
        %v790 = vmul.f32 %v766, %v446
        %v791 = vmul.f32 %v767, %v446
        %v792 = vmul.f32 %v768, %v446
        %v793 = vmul.f32 %v769, %v446
        %v794 = vmul.f32 %v770, %v446
        %v795 = vadd.f32 %v738, %v787
        %v796 = vadd.f32 %v739, %v788
        %v797 = vadd.f32 %v740, %v789
        %v798 = vadd.f32 %v741, %v790
        %v799 = vadd.f32 %v742, %v791
        %v800 = vadd.f32 %v743, %v792
        %v801 = vadd.f32 %v744, %v793
        %v802 = vadd.f32 %v745, %v794
        %v803 = vmul.f32 %v763, %v466
        %v804 = vmul.f32 %v764, %v466
        %v805 = vmul.f32 %v765, %v466
        %v806 = vmul.f32 %v766, %v466
        %v807 = vmul.f32 %v767, %v466
        %v808 = vmul.f32 %v768, %v466
        %v809 = vmul.f32 %v769, %v466
        %v810 = vmul.f32 %v770, %v466
        %v811 = vadd.f32 %v754, %v803
        %v812 = vadd.f32 %v755, %v804
        %v813 = vadd.f32 %v756, %v805
        %v814 = vadd.f32 %v757, %v806
        %v815 = vadd.f32 %v758, %v807
        %v816 = vadd.f32 %v759, %v808
        %v817 = vadd.f32 %v760, %v809
        %v818 = vadd.f32 %v761, %v810
        %v819 = vrot.slane %v779, 7
        %v820 = vrot.slane %v781, 7
        %v821 = vrot.slane %v783, 7
        %v822 = vrot.slane %v785, 7
        %v823 = vrot.slane %v780, 7
        %v824 = vrot.slane %v782, 7
        %v825 = vrot.slane %v784, 7
        %v826 = vrot.slane %v786, 7
        %v827 = vsel %vm496, %v819, %v823
        %v828 = vsel %vm496, %v820, %v824
        %v829 = vsel %vm496, %v821, %v825
        %v830 = vsel %vm496, %v822, %v826
        %v831 = vsel %vm496, %v823, %v819
        %v832 = vsel %vm496, %v824, %v820
        %v833 = vsel %vm496, %v825, %v821
        %v834 = vsel %vm496, %v826, %v822
        %v835 = vsel %vm486, %v831, 0.0
        %v836 = vsel %vm487, %v827, 0.0
        %v837 = vsel %vm486, %v832, 0.0
        %v838 = vsel %vm487, %v828, 0.0
        %v839 = vsel %vm486, %v833, 0.0
        %v840 = vsel %vm487, %v829, 0.0
        %v841 = vsel %vm486, %v834, 0.0
        %v842 = vsel %vm487, %v830, 0.0
        %v843 = vadd.f32 %v795, %v835
        %v844 = vadd.f32 %v796, %v836
        %v845 = vadd.f32 %v797, %v837
        %v846 = vadd.f32 %v798, %v838
        %v847 = vadd.f32 %v799, %v839
        %v848 = vadd.f32 %v800, %v840
        %v849 = vadd.f32 %v801, %v841
        %v850 = vadd.f32 %v802, %v842
        %v851 = vrot.slane %v811, 1
        %v852 = vrot.slane %v813, 1
        %v853 = vrot.slane %v815, 1
        %v854 = vrot.slane %v817, 1
        %v855 = vrot.slane %v812, 1
        %v856 = vrot.slane %v814, 1
        %v857 = vrot.slane %v816, 1
        %v858 = vrot.slane %v818, 1
        %v859 = vsel %vm531, %v851, %v855
        %v860 = vsel %vm531, %v852, %v856
        %v861 = vsel %vm531, %v853, %v857
        %v862 = vsel %vm531, %v854, %v858
        %v863 = vsel %vm531, %v855, %v851
        %v864 = vsel %vm531, %v856, %v852
        %v865 = vsel %vm531, %v857, %v853
        %v866 = vsel %vm531, %v858, %v854
        %v867 = vsel %vm521, %v859, 0.0
        %v868 = vsel %vm522, %v863, 0.0
        %v869 = vsel %vm521, %v860, 0.0
        %v870 = vsel %vm522, %v864, 0.0
        %v871 = vsel %vm521, %v861, 0.0
        %v872 = vsel %vm522, %v865, 0.0
        %v873 = vsel %vm521, %v862, 0.0
        %v874 = vsel %vm522, %v866, 0.0
        %v875 = vadd.f32 %v843, %v867
        %v876 = vadd.f32 %v844, %v868
        %v877 = vadd.f32 %v845, %v869
        %v878 = vadd.f32 %v846, %v870
        %v879 = vadd.f32 %v847, %v871
        %v880 = vadd.f32 %v848, %v872
        %v881 = vadd.f32 %v849, %v873
        %v882 = vadd.f32 %v850, %v874
        %v883 = vmul.f32 %v875, 0.5
        %v884 = vmul.f32 %v876, 0.5
        %v885 = vmul.f32 %v877, 0.5
        %v886 = vmul.f32 %v878, 0.5
        %v887 = vmul.f32 %v879, 0.5
        %v888 = vmul.f32 %v880, 0.5
        %v889 = vmul.f32 %v881, 0.5
        %v890 = vmul.f32 %v882, 0.5
        %v891 = vmul.f32 %v875, %v875
        %v892 = vmul.f32 %v876, %v876
        %v893 = vmul.f32 %v877, %v877
        %v894 = vmul.f32 %v878, %v878
        %v895 = vmul.f32 %v879, %v879
        %v896 = vmul.f32 %v880, %v880
        %v897 = vmul.f32 %v881, %v881
        %v898 = vmul.f32 %v882, %v882
        %v899 = vmul.f32 %v891, %v875
        %v900 = vmul.f32 %v892, %v876
        %v901 = vmul.f32 %v893, %v877
        %v902 = vmul.f32 %v894, %v878
        %v903 = vmul.f32 %v895, %v879
        %v904 = vmul.f32 %v896, %v880
        %v905 = vmul.f32 %v897, %v881
        %v906 = vmul.f32 %v898, %v882
        %v907 = vmul.f32 %v899, 0.044715
        %v908 = vmul.f32 %v900, 0.044715
        %v909 = vmul.f32 %v901, 0.044715
        %v910 = vmul.f32 %v902, 0.044715
        %v911 = vmul.f32 %v903, 0.044715
        %v912 = vmul.f32 %v904, 0.044715
        %v913 = vmul.f32 %v905, 0.044715
        %v914 = vmul.f32 %v906, 0.044715
        %v915 = vadd.f32 %v875, %v907
        %v916 = vadd.f32 %v876, %v908
        %v917 = vadd.f32 %v877, %v909
        %v918 = vadd.f32 %v878, %v910
        %v919 = vadd.f32 %v879, %v911
        %v920 = vadd.f32 %v880, %v912
        %v921 = vadd.f32 %v881, %v913
        %v922 = vadd.f32 %v882, %v914
        %v923 = vmul.f32 %v915, 0.7978846
        %v924 = vmul.f32 %v916, 0.7978846
        %v925 = vmul.f32 %v917, 0.7978846
        %v926 = vmul.f32 %v918, 0.7978846
        %v927 = vmul.f32 %v919, 0.7978846
        %v928 = vmul.f32 %v920, 0.7978846
        %v929 = vmul.f32 %v921, 0.7978846
        %v930 = vmul.f32 %v922, 0.7978846
        %v931 = vtanh.pop %v923
        %v932 = vtanh.pop %v924
        %v933 = vtanh.pop %v925
        %v934 = vtanh.pop %v926
        %v935 = vtanh.pop %v927
        %v936 = vtanh.pop %v928
        %v937 = vtanh.pop %v929
        %v938 = vtanh.pop %v930
        %v939 = vadd.f32 %v931, 1.0
        %v940 = vadd.f32 %v932, 1.0
        %v941 = vadd.f32 %v933, 1.0
        %v942 = vadd.f32 %v934, 1.0
        %v943 = vadd.f32 %v935, 1.0
        %v944 = vadd.f32 %v936, 1.0
        %v945 = vadd.f32 %v937, 1.0
        %v946 = vadd.f32 %v938, 1.0
        %v947 = vmul.f32 %v883, %v939
        %v948 = vmul.f32 %v884, %v940
        %v949 = vmul.f32 %v885, %v941
        %v950 = vmul.f32 %v886, %v942
        %v951 = vmul.f32 %v887, %v943
        %v952 = vmul.f32 %v888, %v944
        %v953 = vmul.f32 %v889, %v945
        %v954 = vmul.f32 %v890, %v946
        %v955 = vmul.f32 %v947, %v632
        %v956 = vmul.f32 %v948, %v632
        %v957 = vmul.f32 %v949, %v632
        %v958 = vmul.f32 %v950, %v632
        %v959 = vmul.f32 %v951, %v632
        %v960 = vmul.f32 %v952, %v632
        %v961 = vmul.f32 %v953, %v632
        %v962 = vmul.f32 %v954, %v632
        %v963 = vadd.f32 %v955, %v646
        %v964 = vadd.f32 %v956, %v646
        %v965 = vadd.f32 %v957, %v646
        %v966 = vadd.f32 %v958, %v646
        %v967 = vadd.f32 %v959, %v646
        %v968 = vadd.f32 %v960, %v646
        %v969 = vadd.f32 %v961, %v646
        %v970 = vadd.f32 %v962, %v646
        %v971 = vadd.f32 %v963, %v706
        %v972 = vadd.f32 %v964, %v707
        %v973 = vadd.f32 %v965, %v708
        %v974 = vadd.f32 %v966, %v709
        %v975 = vadd.f32 %v967, %v710
        %v976 = vadd.f32 %v968, %v711
        %v977 = vadd.f32 %v969, %v712
        %v978 = vadd.f32 %v970, %v713
        %s979 = scalar_lea.vmem %s293, 64 [#allocation7]
        %980 = vst [vmem:[%s979] sm:$0xff] %v971
        %981 = vst [vmem:[%s979 + $0x8] sm:$0xff] %v972
        %982 = vst [vmem:[%s979 + $0x10] sm:$0xff] %v973
        %983 = vst [vmem:[%s979 + $0x18] sm:$0xff] %v974
        %984 = vst [vmem:[%s979 + $0x20] sm:$0xff] %v975
        %985 = vst [vmem:[%s979 + $0x28] sm:$0xff] %v976
        %986 = vst [vmem:[%s979 + $0x30] sm:$0xff] %v977
        %987 = vst [vmem:[%s979 + $0x38] sm:$0xff] %v978
        %s988 = scalar_lea.vmem %s249, 112 [#allocation2]
        %v989 = vld [vmem:[%s988] sm:$0xff]
        %v990 = vld [vmem:[%s988 + $0x8] sm:$0xff]
        %v991 = vld [vmem:[%s988 + $0x10] sm:$0xff]
        %v992 = vld [vmem:[%s988 + $0x18] sm:$0xff]
        %v993 = vld [vmem:[%s988 + $0x20] sm:$0xff]
        %v994 = vld [vmem:[%s988 + $0x28] sm:$0xff]
        %v995 = vld [vmem:[%s988 + $0x30] sm:$0xff]
        %v996 = vld [vmem:[%s988 + $0x38] sm:$0xff]
        %v997 = vmul.f32 %v989, %v322
        %v998 = vmul.f32 %v990, %v322
        %v999 = vmul.f32 %v991, %v322
        %v1000 = vmul.f32 %v992, %v322
        %v1001 = vmul.f32 %v993, %v322
        %v1002 = vmul.f32 %v994, %v322
        %v1003 = vmul.f32 %v995, %v322
        %v1004 = vmul.f32 %v996, %v322
        %v1005 = vmul.f32 %v989, %v333
        %v1006 = vmul.f32 %v990, %v333
        %v1007 = vmul.f32 %v991, %v333
        %v1008 = vmul.f32 %v992, %v333
        %v1009 = vmul.f32 %v993, %v333
        %v1010 = vmul.f32 %v994, %v333
        %v1011 = vmul.f32 %v995, %v333
        %v1012 = vmul.f32 %v996, %v333
        %v1013 = vmul.f32 %v989, %v344
        %v1014 = vmul.f32 %v990, %v344
        %v1015 = vmul.f32 %v991, %v344
        %v1016 = vmul.f32 %v992, %v344
        %v1017 = vmul.f32 %v993, %v344
        %v1018 = vmul.f32 %v994, %v344
        %v1019 = vmul.f32 %v995, %v344
        %v1020 = vmul.f32 %v996, %v344
        %s1021 = scalar_lea.vmem %s249, 128 [#allocation2]
        %v1022 = vld [vmem:[%s1021] sm:$0xff]
        %v1023 = vld [vmem:[%s1021 + $0x8] sm:$0xff]
        %v1024 = vld [vmem:[%s1021 + $0x10] sm:$0xff]
        %v1025 = vld [vmem:[%s1021 + $0x18] sm:$0xff]
        %v1026 = vld [vmem:[%s1021 + $0x20] sm:$0xff]
        %v1027 = vld [vmem:[%s1021 + $0x28] sm:$0xff]
        %v1028 = vld [vmem:[%s1021 + $0x30] sm:$0xff]
        %v1029 = vld [vmem:[%s1021 + $0x38] sm:$0xff]
        %v1030 = vmul.f32 %v1022, %v357
        %v1031 = vmul.f32 %v1023, %v357
        %v1032 = vmul.f32 %v1024, %v357
        %v1033 = vmul.f32 %v1025, %v357
        %v1034 = vmul.f32 %v1026, %v357
        %v1035 = vmul.f32 %v1027, %v357
        %v1036 = vmul.f32 %v1028, %v357
        %v1037 = vmul.f32 %v1029, %v357
        %v1038 = vadd.f32 %v997, %v1030
        %v1039 = vadd.f32 %v998, %v1031
        %v1040 = vadd.f32 %v999, %v1032
        %v1041 = vadd.f32 %v1000, %v1033
        %v1042 = vadd.f32 %v1001, %v1034
        %v1043 = vadd.f32 %v1002, %v1035
        %v1044 = vadd.f32 %v1003, %v1036
        %v1045 = vadd.f32 %v1004, %v1037
        %v1046 = vmul.f32 %v1022, %v377
        %v1047 = vmul.f32 %v1023, %v377
        %v1048 = vmul.f32 %v1024, %v377
        %v1049 = vmul.f32 %v1025, %v377
        %v1050 = vmul.f32 %v1026, %v377
        %v1051 = vmul.f32 %v1027, %v377
        %v1052 = vmul.f32 %v1028, %v377
        %v1053 = vmul.f32 %v1029, %v377
        %v1054 = vadd.f32 %v1005, %v1046
        %v1055 = vadd.f32 %v1006, %v1047
        %v1056 = vadd.f32 %v1007, %v1048
        %v1057 = vadd.f32 %v1008, %v1049
        %v1058 = vadd.f32 %v1009, %v1050
        %v1059 = vadd.f32 %v1010, %v1051
        %v1060 = vadd.f32 %v1011, %v1052
        %v1061 = vadd.f32 %v1012, %v1053
        %v1062 = vmul.f32 %v1022, %v397
        %v1063 = vmul.f32 %v1023, %v397
        %v1064 = vmul.f32 %v1024, %v397
        %v1065 = vmul.f32 %v1025, %v397
        %v1066 = vmul.f32 %v1026, %v397
        %v1067 = vmul.f32 %v1027, %v397
        %v1068 = vmul.f32 %v1028, %v397
        %v1069 = vmul.f32 %v1029, %v397
        %v1070 = vadd.f32 %v1013, %v1062
        %v1071 = vadd.f32 %v1014, %v1063
        %v1072 = vadd.f32 %v1015, %v1064
        %v1073 = vadd.f32 %v1016, %v1065
        %v1074 = vadd.f32 %v1017, %v1066
        %v1075 = vadd.f32 %v1018, %v1067
        %v1076 = vadd.f32 %v1019, %v1068
        %v1077 = vadd.f32 %v1020, %v1069
        %s1078 = scalar_lea.vmem %s249, 144 [#allocation2]
        %v1079 = vld [vmem:[%s1078] sm:$0xff]
        %v1080 = vld [vmem:[%s1078 + $0x8] sm:$0xff]
        %v1081 = vld [vmem:[%s1078 + $0x10] sm:$0xff]
        %v1082 = vld [vmem:[%s1078 + $0x18] sm:$0xff]
        %v1083 = vld [vmem:[%s1078 + $0x20] sm:$0xff]
        %v1084 = vld [vmem:[%s1078 + $0x28] sm:$0xff]
        %v1085 = vld [vmem:[%s1078 + $0x30] sm:$0xff]
        %v1086 = vld [vmem:[%s1078 + $0x38] sm:$0xff]
        %v1087 = vmul.f32 %v1079, %v426
        %v1088 = vmul.f32 %v1080, %v426
        %v1089 = vmul.f32 %v1081, %v426
        %v1090 = vmul.f32 %v1082, %v426
        %v1091 = vmul.f32 %v1083, %v426
        %v1092 = vmul.f32 %v1084, %v426
        %v1093 = vmul.f32 %v1085, %v426
        %v1094 = vmul.f32 %v1086, %v426
        %v1095 = vadd.f32 %v1038, %v1087
        %v1096 = vadd.f32 %v1039, %v1088
        %v1097 = vadd.f32 %v1040, %v1089
        %v1098 = vadd.f32 %v1041, %v1090
        %v1099 = vadd.f32 %v1042, %v1091
        %v1100 = vadd.f32 %v1043, %v1092
        %v1101 = vadd.f32 %v1044, %v1093
        %v1102 = vadd.f32 %v1045, %v1094
        %v1103 = vmul.f32 %v1079, %v446
        %v1104 = vmul.f32 %v1080, %v446
        %v1105 = vmul.f32 %v1081, %v446
        %v1106 = vmul.f32 %v1082, %v446
        %v1107 = vmul.f32 %v1083, %v446
        %v1108 = vmul.f32 %v1084, %v446
        %v1109 = vmul.f32 %v1085, %v446
        %v1110 = vmul.f32 %v1086, %v446
        %v1111 = vadd.f32 %v1054, %v1103
        %v1112 = vadd.f32 %v1055, %v1104
        %v1113 = vadd.f32 %v1056, %v1105
        %v1114 = vadd.f32 %v1057, %v1106
        %v1115 = vadd.f32 %v1058, %v1107
        %v1116 = vadd.f32 %v1059, %v1108
        %v1117 = vadd.f32 %v1060, %v1109
        %v1118 = vadd.f32 %v1061, %v1110
        %v1119 = vmul.f32 %v1079, %v466
        %v1120 = vmul.f32 %v1080, %v466
        %v1121 = vmul.f32 %v1081, %v466
        %v1122 = vmul.f32 %v1082, %v466
        %v1123 = vmul.f32 %v1083, %v466
        %v1124 = vmul.f32 %v1084, %v466
        %v1125 = vmul.f32 %v1085, %v466
        %v1126 = vmul.f32 %v1086, %v466
        %v1127 = vadd.f32 %v1070, %v1119
        %v1128 = vadd.f32 %v1071, %v1120
        %v1129 = vadd.f32 %v1072, %v1121
        %v1130 = vadd.f32 %v1073, %v1122
        %v1131 = vadd.f32 %v1074, %v1123
        %v1132 = vadd.f32 %v1075, %v1124
        %v1133 = vadd.f32 %v1076, %v1125
        %v1134 = vadd.f32 %v1077, %v1126
        %v1135 = vrot.slane %v1095, 7
        %v1136 = vrot.slane %v1097, 7
        %v1137 = vrot.slane %v1099, 7
        %v1138 = vrot.slane %v1101, 7
        %v1139 = vrot.slane %v1096, 7
        %v1140 = vrot.slane %v1098, 7
        %v1141 = vrot.slane %v1100, 7
        %v1142 = vrot.slane %v1102, 7
        %v1143 = vsel %vm496, %v1135, %v1139
        %v1144 = vsel %vm496, %v1136, %v1140
        %v1145 = vsel %vm496, %v1137, %v1141
        %v1146 = vsel %vm496, %v1138, %v1142
        %v1147 = vsel %vm496, %v1139, %v1135
        %v1148 = vsel %vm496, %v1140, %v1136
        %v1149 = vsel %vm496, %v1141, %v1137
        %v1150 = vsel %vm496, %v1142, %v1138
        %v1151 = vsel %vm486, %v1147, 0.0
        %v1152 = vsel %vm487, %v1143, 0.0
        %v1153 = vsel %vm486, %v1148, 0.0
        %v1154 = vsel %vm487, %v1144, 0.0
        %v1155 = vsel %vm486, %v1149, 0.0
        %v1156 = vsel %vm487, %v1145, 0.0
        %v1157 = vsel %vm486, %v1150, 0.0
        %v1158 = vsel %vm487, %v1146, 0.0
        %v1159 = vadd.f32 %v1111, %v1151
        %v1160 = vadd.f32 %v1112, %v1152
        %v1161 = vadd.f32 %v1113, %v1153
        %v1162 = vadd.f32 %v1114, %v1154
        %v1163 = vadd.f32 %v1115, %v1155
        %v1164 = vadd.f32 %v1116, %v1156
        %v1165 = vadd.f32 %v1117, %v1157
        %v1166 = vadd.f32 %v1118, %v1158
        %v1167 = vrot.slane %v1127, 1
        %v1168 = vrot.slane %v1129, 1
        %v1169 = vrot.slane %v1131, 1
        %v1170 = vrot.slane %v1133, 1
        %v1171 = vrot.slane %v1128, 1
        %v1172 = vrot.slane %v1130, 1
        %v1173 = vrot.slane %v1132, 1
        %v1174 = vrot.slane %v1134, 1
        %v1175 = vsel %vm531, %v1167, %v1171
        %v1176 = vsel %vm531, %v1168, %v1172
        %v1177 = vsel %vm531, %v1169, %v1173
        %v1178 = vsel %vm531, %v1170, %v1174
        %v1179 = vsel %vm531, %v1171, %v1167
        %v1180 = vsel %vm531, %v1172, %v1168
        %v1181 = vsel %vm531, %v1173, %v1169
        %v1182 = vsel %vm531, %v1174, %v1170
        %v1183 = vsel %vm521, %v1175, 0.0
        %v1184 = vsel %vm522, %v1179, 0.0
        %v1185 = vsel %vm521, %v1176, 0.0
        %v1186 = vsel %vm522, %v1180, 0.0
        %v1187 = vsel %vm521, %v1177, 0.0
        %v1188 = vsel %vm522, %v1181, 0.0
        %v1189 = vsel %vm521, %v1178, 0.0
        %v1190 = vsel %vm522, %v1182, 0.0
        %v1191 = vadd.f32 %v1159, %v1183
        %v1192 = vadd.f32 %v1160, %v1184
        %v1193 = vadd.f32 %v1161, %v1185
        %v1194 = vadd.f32 %v1162, %v1186
        %v1195 = vadd.f32 %v1163, %v1187
        %v1196 = vadd.f32 %v1164, %v1188
        %v1197 = vadd.f32 %v1165, %v1189
        %v1198 = vadd.f32 %v1166, %v1190
        %v1199 = vmul.f32 %v1191, 0.5
        %v1200 = vmul.f32 %v1192, 0.5
        %v1201 = vmul.f32 %v1193, 0.5
        %v1202 = vmul.f32 %v1194, 0.5
        %v1203 = vmul.f32 %v1195, 0.5
        %v1204 = vmul.f32 %v1196, 0.5
        %v1205 = vmul.f32 %v1197, 0.5
        %v1206 = vmul.f32 %v1198, 0.5
        %v1207 = vmul.f32 %v1191, %v1191
        %v1208 = vmul.f32 %v1192, %v1192
        %v1209 = vmul.f32 %v1193, %v1193
        %v1210 = vmul.f32 %v1194, %v1194
        %v1211 = vmul.f32 %v1195, %v1195
        %v1212 = vmul.f32 %v1196, %v1196
        %v1213 = vmul.f32 %v1197, %v1197
        %v1214 = vmul.f32 %v1198, %v1198
        %v1215 = vmul.f32 %v1207, %v1191
        %v1216 = vmul.f32 %v1208, %v1192
        %v1217 = vmul.f32 %v1209, %v1193
        %v1218 = vmul.f32 %v1210, %v1194
        %v1219 = vmul.f32 %v1211, %v1195
        %v1220 = vmul.f32 %v1212, %v1196
        %v1221 = vmul.f32 %v1213, %v1197
        %v1222 = vmul.f32 %v1214, %v1198
        %v1223 = vmul.f32 %v1215, 0.044715
        %v1224 = vmul.f32 %v1216, 0.044715
        %v1225 = vmul.f32 %v1217, 0.044715
        %v1226 = vmul.f32 %v1218, 0.044715
        %v1227 = vmul.f32 %v1219, 0.044715
        %v1228 = vmul.f32 %v1220, 0.044715
        %v1229 = vmul.f32 %v1221, 0.044715
        %v1230 = vmul.f32 %v1222, 0.044715
        %v1231 = vadd.f32 %v1191, %v1223
        %v1232 = vadd.f32 %v1192, %v1224
        %v1233 = vadd.f32 %v1193, %v1225
        %v1234 = vadd.f32 %v1194, %v1226
        %v1235 = vadd.f32 %v1195, %v1227
        %v1236 = vadd.f32 %v1196, %v1228
        %v1237 = vadd.f32 %v1197, %v1229
        %v1238 = vadd.f32 %v1198, %v1230
        %v1239 = vmul.f32 %v1231, 0.7978846
        %v1240 = vmul.f32 %v1232, 0.7978846
        %v1241 = vmul.f32 %v1233, 0.7978846
        %v1242 = vmul.f32 %v1234, 0.7978846
        %v1243 = vmul.f32 %v1235, 0.7978846
        %v1244 = vmul.f32 %v1236, 0.7978846
        %v1245 = vmul.f32 %v1237, 0.7978846
        %v1246 = vmul.f32 %v1238, 0.7978846
        %v1247 = vtanh.pop %v1239
        %v1248 = vtanh.pop %v1240
        %v1249 = vtanh.pop %v1241
        %v1250 = vtanh.pop %v1242
        %v1251 = vtanh.pop %v1243
        %v1252 = vtanh.pop %v1244
        %v1253 = vtanh.pop %v1245
        %v1254 = vtanh.pop %v1246
        %v1255 = vadd.f32 %v1247, 1.0
        %v1256 = vadd.f32 %v1248, 1.0
        %v1257 = vadd.f32 %v1249, 1.0
        %v1258 = vadd.f32 %v1250, 1.0
        %v1259 = vadd.f32 %v1251, 1.0
        %v1260 = vadd.f32 %v1252, 1.0
        %v1261 = vadd.f32 %v1253, 1.0
        %v1262 = vadd.f32 %v1254, 1.0
        %v1263 = vmul.f32 %v1199, %v1255
        %v1264 = vmul.f32 %v1200, %v1256
        %v1265 = vmul.f32 %v1201, %v1257
        %v1266 = vmul.f32 %v1202, %v1258
        %v1267 = vmul.f32 %v1203, %v1259
        %v1268 = vmul.f32 %v1204, %v1260
        %v1269 = vmul.f32 %v1205, %v1261
        %v1270 = vmul.f32 %v1206, %v1262
        %v1271 = vmul.f32 %v1263, %v632
        %v1272 = vmul.f32 %v1264, %v632
        %v1273 = vmul.f32 %v1265, %v632
        %v1274 = vmul.f32 %v1266, %v632
        %v1275 = vmul.f32 %v1267, %v632
        %v1276 = vmul.f32 %v1268, %v632
        %v1277 = vmul.f32 %v1269, %v632
        %v1278 = vmul.f32 %v1270, %v632
        %v1279 = vadd.f32 %v1271, %v646
        %v1280 = vadd.f32 %v1272, %v646
        %v1281 = vadd.f32 %v1273, %v646
        %v1282 = vadd.f32 %v1274, %v646
        %v1283 = vadd.f32 %v1275, %v646
        %v1284 = vadd.f32 %v1276, %v646
        %v1285 = vadd.f32 %v1277, %v646
        %v1286 = vadd.f32 %v1278, %v646
        %v1287 = vadd.f32 %v1279, %v1022
        %v1288 = vadd.f32 %v1280, %v1023
        %v1289 = vadd.f32 %v1281, %v1024
        %v1290 = vadd.f32 %v1282, %v1025
        %v1291 = vadd.f32 %v1283, %v1026
        %v1292 = vadd.f32 %v1284, %v1027
        %v1293 = vadd.f32 %v1285, %v1028
        %v1294 = vadd.f32 %v1286, %v1029
        %s1295 = scalar_lea.vmem %s293, 128 [#allocation7]
        %1296 = vst [vmem:[%s1295] sm:$0xff] %v1287
        %1297 = vst [vmem:[%s1295 + $0x8] sm:$0xff] %v1288
        %1298 = vst [vmem:[%s1295 + $0x10] sm:$0xff] %v1289
        %1299 = vst [vmem:[%s1295 + $0x18] sm:$0xff] %v1290
        %1300 = vst [vmem:[%s1295 + $0x20] sm:$0xff] %v1291
        %1301 = vst [vmem:[%s1295 + $0x28] sm:$0xff] %v1292
        %1302 = vst [vmem:[%s1295 + $0x30] sm:$0xff] %v1293
        %1303 = vst [vmem:[%s1295 + $0x38] sm:$0xff] %v1294
        %s1304 = scalar_lea.vmem %s249, 176 [#allocation2]
        %v1305 = vld [vmem:[%s1304] sm:$0xff]
        %v1306 = vld [vmem:[%s1304 + $0x8] sm:$0xff]
        %v1307 = vld [vmem:[%s1304 + $0x10] sm:$0xff]
        %v1308 = vld [vmem:[%s1304 + $0x18] sm:$0xff]
        %v1309 = vld [vmem:[%s1304 + $0x20] sm:$0xff]
        %v1310 = vld [vmem:[%s1304 + $0x28] sm:$0xff]
        %v1311 = vld [vmem:[%s1304 + $0x30] sm:$0xff]
        %v1312 = vld [vmem:[%s1304 + $0x38] sm:$0xff]
        %v1313 = vmul.f32 %v1305, %v322
        %v1314 = vmul.f32 %v1306, %v322
        %v1315 = vmul.f32 %v1307, %v322
        %v1316 = vmul.f32 %v1308, %v322
        %v1317 = vmul.f32 %v1309, %v322
        %v1318 = vmul.f32 %v1310, %v322
        %v1319 = vmul.f32 %v1311, %v322
        %v1320 = vmul.f32 %v1312, %v322
        %v1321 = vmul.f32 %v1305, %v333
        %v1322 = vmul.f32 %v1306, %v333
        %v1323 = vmul.f32 %v1307, %v333
        %v1324 = vmul.f32 %v1308, %v333
        %v1325 = vmul.f32 %v1309, %v333
        %v1326 = vmul.f32 %v1310, %v333
        %v1327 = vmul.f32 %v1311, %v333
        %v1328 = vmul.f32 %v1312, %v333
        %v1329 = vmul.f32 %v1305, %v344
        %v1330 = vmul.f32 %v1306, %v344
        %v1331 = vmul.f32 %v1307, %v344
        %v1332 = vmul.f32 %v1308, %v344
        %v1333 = vmul.f32 %v1309, %v344
        %v1334 = vmul.f32 %v1310, %v344
        %v1335 = vmul.f32 %v1311, %v344
        %v1336 = vmul.f32 %v1312, %v344
        %s1337 = scalar_lea.vmem %s249, 192 [#allocation2]
        %v1338 = vld [vmem:[%s1337] sm:$0xff]
        %v1339 = vld [vmem:[%s1337 + $0x8] sm:$0xff]
        %v1340 = vld [vmem:[%s1337 + $0x10] sm:$0xff]
        %v1341 = vld [vmem:[%s1337 + $0x18] sm:$0xff]
        %v1342 = vld [vmem:[%s1337 + $0x20] sm:$0xff]
        %v1343 = vld [vmem:[%s1337 + $0x28] sm:$0xff]
        %v1344 = vld [vmem:[%s1337 + $0x30] sm:$0xff]
        %v1345 = vld [vmem:[%s1337 + $0x38] sm:$0xff]
        %v1346 = vmul.f32 %v1338, %v357
        %v1347 = vmul.f32 %v1339, %v357
        %v1348 = vmul.f32 %v1340, %v357
        %v1349 = vmul.f32 %v1341, %v357
        %v1350 = vmul.f32 %v1342, %v357
        %v1351 = vmul.f32 %v1343, %v357
        %v1352 = vmul.f32 %v1344, %v357
        %v1353 = vmul.f32 %v1345, %v357
        %v1354 = vadd.f32 %v1313, %v1346
        %v1355 = vadd.f32 %v1314, %v1347
        %v1356 = vadd.f32 %v1315, %v1348
        %v1357 = vadd.f32 %v1316, %v1349
        %v1358 = vadd.f32 %v1317, %v1350
        %v1359 = vadd.f32 %v1318, %v1351
        %v1360 = vadd.f32 %v1319, %v1352
        %v1361 = vadd.f32 %v1320, %v1353
        %v1362 = vmul.f32 %v1338, %v377
        %v1363 = vmul.f32 %v1339, %v377
        %v1364 = vmul.f32 %v1340, %v377
        %v1365 = vmul.f32 %v1341, %v377
        %v1366 = vmul.f32 %v1342, %v377
        %v1367 = vmul.f32 %v1343, %v377
        %v1368 = vmul.f32 %v1344, %v377
        %v1369 = vmul.f32 %v1345, %v377
        %v1370 = vadd.f32 %v1321, %v1362
        %v1371 = vadd.f32 %v1322, %v1363
        %v1372 = vadd.f32 %v1323, %v1364
        %v1373 = vadd.f32 %v1324, %v1365
        %v1374 = vadd.f32 %v1325, %v1366
        %v1375 = vadd.f32 %v1326, %v1367
        %v1376 = vadd.f32 %v1327, %v1368
        %v1377 = vadd.f32 %v1328, %v1369
        %v1378 = vmul.f32 %v1338, %v397
        %v1379 = vmul.f32 %v1339, %v397
        %v1380 = vmul.f32 %v1340, %v397
        %v1381 = vmul.f32 %v1341, %v397
        %v1382 = vmul.f32 %v1342, %v397
        %v1383 = vmul.f32 %v1343, %v397
        %v1384 = vmul.f32 %v1344, %v397
        %v1385 = vmul.f32 %v1345, %v397
        %v1386 = vadd.f32 %v1329, %v1378
        %v1387 = vadd.f32 %v1330, %v1379
        %v1388 = vadd.f32 %v1331, %v1380
        %v1389 = vadd.f32 %v1332, %v1381
        %v1390 = vadd.f32 %v1333, %v1382
        %v1391 = vadd.f32 %v1334, %v1383
        %v1392 = vadd.f32 %v1335, %v1384
        %v1393 = vadd.f32 %v1336, %v1385
        %s1394 = scalar_lea.vmem %s249, 208 [#allocation2]
        %v1395 = vld [vmem:[%s1394] sm:$0xff]
        %v1396 = vld [vmem:[%s1394 + $0x8] sm:$0xff]
        %v1397 = vld [vmem:[%s1394 + $0x10] sm:$0xff]
        %v1398 = vld [vmem:[%s1394 + $0x18] sm:$0xff]
        %v1399 = vld [vmem:[%s1394 + $0x20] sm:$0xff]
        %v1400 = vld [vmem:[%s1394 + $0x28] sm:$0xff]
        %v1401 = vmul.f32 %v1395, %v426
        %v1402 = vmul.f32 %v1396, %v426
        %v1403 = vmul.f32 %v1397, %v426
        %v1404 = vmul.f32 %v1398, %v426
        %v1405 = vmul.f32 %v1399, %v426
        %v1406 = vmul.f32 %v1400, %v426
        %v1407 = vmul.f32 %v426, 0.0
        %v1408 = vadd.f32 %v1354, %v1401
        %v1409 = vadd.f32 %v1355, %v1402
        %v1410 = vadd.f32 %v1356, %v1403
        %v1411 = vadd.f32 %v1357, %v1404
        %v1412 = vadd.f32 %v1358, %v1405
        %v1413 = vadd.f32 %v1359, %v1406
        %v1414 = vadd.f32 %v1360, %v1407
        %v1415 = vadd.f32 %v1361, %v1407
        %v1416 = vmul.f32 %v1395, %v446
        %v1417 = vmul.f32 %v1396, %v446
        %v1418 = vmul.f32 %v1397, %v446
        %v1419 = vmul.f32 %v1398, %v446
        %v1420 = vmul.f32 %v1399, %v446
        %v1421 = vmul.f32 %v1400, %v446
        %v1422 = vmul.f32 %v446, 0.0
        %v1423 = vadd.f32 %v1370, %v1416
        %v1424 = vadd.f32 %v1371, %v1417
        %v1425 = vadd.f32 %v1372, %v1418
        %v1426 = vadd.f32 %v1373, %v1419
        %v1427 = vadd.f32 %v1374, %v1420
        %v1428 = vadd.f32 %v1375, %v1421
        %v1429 = vadd.f32 %v1376, %v1422
        %v1430 = vadd.f32 %v1377, %v1422
        %v1431 = vmul.f32 %v1395, %v466
        %v1432 = vmul.f32 %v1396, %v466
        %v1433 = vmul.f32 %v1397, %v466
        %v1434 = vmul.f32 %v1398, %v466
        %v1435 = vmul.f32 %v1399, %v466
        %v1436 = vmul.f32 %v1400, %v466
        %v1437 = vmul.f32 %v466, 0.0
        %v1438 = vadd.f32 %v1386, %v1431
        %v1439 = vadd.f32 %v1387, %v1432
        %v1440 = vadd.f32 %v1388, %v1433
        %v1441 = vadd.f32 %v1389, %v1434
        %v1442 = vadd.f32 %v1390, %v1435
        %v1443 = vadd.f32 %v1391, %v1436
        %v1444 = vadd.f32 %v1392, %v1437
        %v1445 = vadd.f32 %v1393, %v1437
        %v1446 = vrot.slane %v1408, 7
        %v1447 = vrot.slane %v1410, 7
        %v1448 = vrot.slane %v1412, 7
        %v1449 = vrot.slane %v1414, 7
        %v1450 = vrot.slane %v1409, 7
        %v1451 = vrot.slane %v1411, 7
        %v1452 = vrot.slane %v1413, 7
        %v1453 = vrot.slane %v1415, 7
        %v1454 = vsel %vm496, %v1446, %v1450
        %v1455 = vsel %vm496, %v1447, %v1451
        %v1456 = vsel %vm496, %v1448, %v1452
        %v1457 = vsel %vm496, %v1449, %v1453
        %v1458 = vsel %vm496, %v1450, %v1446
        %v1459 = vsel %vm496, %v1451, %v1447
        %v1460 = vsel %vm496, %v1452, %v1448
        %v1461 = vsel %vm496, %v1453, %v1449
        %v1462 = vsel %vm486, %v1458, 0.0
        %v1463 = vsel %vm487, %v1454, 0.0
        %v1464 = vsel %vm486, %v1459, 0.0
        %v1465 = vsel %vm487, %v1455, 0.0
        %v1466 = vsel %vm486, %v1460, 0.0
        %v1467 = vsel %vm487, %v1456, 0.0
        %v1468 = vsel %vm486, %v1461, 0.0
        %v1469 = vsel %vm487, %v1457, 0.0
        %v1470 = vadd.f32 %v1423, %v1462
        %v1471 = vadd.f32 %v1424, %v1463
        %v1472 = vadd.f32 %v1425, %v1464
        %v1473 = vadd.f32 %v1426, %v1465
        %v1474 = vadd.f32 %v1427, %v1466
        %v1475 = vadd.f32 %v1428, %v1467
        %v1476 = vadd.f32 %v1429, %v1468
        %v1477 = vadd.f32 %v1430, %v1469
        %v1478 = vrot.slane %v1438, 1
        %v1479 = vrot.slane %v1440, 1
        %v1480 = vrot.slane %v1442, 1
        %v1481 = vrot.slane %v1444, 1
        %v1482 = vrot.slane %v1439, 1
        %v1483 = vrot.slane %v1441, 1
        %v1484 = vrot.slane %v1443, 1
        %v1485 = vrot.slane %v1445, 1
        %v1486 = vsel %vm531, %v1478, %v1482
        %v1487 = vsel %vm531, %v1479, %v1483
        %v1488 = vsel %vm531, %v1480, %v1484
        %v1489 = vsel %vm531, %v1481, %v1485
        %v1490 = vsel %vm531, %v1482, %v1478
        %v1491 = vsel %vm531, %v1483, %v1479
        %v1492 = vsel %vm531, %v1484, %v1480
        %v1493 = vsel %vm531, %v1485, %v1481
        %v1494 = vsel %vm521, %v1486, 0.0
        %v1495 = vsel %vm522, %v1490, 0.0
        %v1496 = vsel %vm521, %v1487, 0.0
        %v1497 = vsel %vm522, %v1491, 0.0
        %v1498 = vsel %vm521, %v1488, 0.0
        %v1499 = vsel %vm522, %v1492, 0.0
        %v1500 = vsel %vm521, %v1489, 0.0
        %v1501 = vsel %vm522, %v1493, 0.0
        %v1502 = vadd.f32 %v1470, %v1494
        %v1503 = vadd.f32 %v1471, %v1495
        %v1504 = vadd.f32 %v1472, %v1496
        %v1505 = vadd.f32 %v1473, %v1497
        %v1506 = vadd.f32 %v1474, %v1498
        %v1507 = vadd.f32 %v1475, %v1499
        %v1508 = vadd.f32 %v1476, %v1500
        %v1509 = vadd.f32 %v1477, %v1501
        %v1510 = vmul.f32 %v1502, 0.5
        %v1511 = vmul.f32 %v1503, 0.5
        %v1512 = vmul.f32 %v1504, 0.5
        %v1513 = vmul.f32 %v1505, 0.5
        %v1514 = vmul.f32 %v1506, 0.5
        %v1515 = vmul.f32 %v1507, 0.5
        %v1516 = vmul.f32 %v1508, 0.5
        %v1517 = vmul.f32 %v1509, 0.5
        %v1518 = vmul.f32 %v1502, %v1502
        %v1519 = vmul.f32 %v1503, %v1503
        %v1520 = vmul.f32 %v1504, %v1504
        %v1521 = vmul.f32 %v1505, %v1505
        %v1522 = vmul.f32 %v1506, %v1506
        %v1523 = vmul.f32 %v1507, %v1507
        %v1524 = vmul.f32 %v1508, %v1508
        %v1525 = vmul.f32 %v1509, %v1509
        %v1526 = vmul.f32 %v1518, %v1502
        %v1527 = vmul.f32 %v1519, %v1503
        %v1528 = vmul.f32 %v1520, %v1504
        %v1529 = vmul.f32 %v1521, %v1505
        %v1530 = vmul.f32 %v1522, %v1506
        %v1531 = vmul.f32 %v1523, %v1507
        %v1532 = vmul.f32 %v1524, %v1508
        %v1533 = vmul.f32 %v1525, %v1509
        %v1534 = vmul.f32 %v1526, 0.044715
        %v1535 = vmul.f32 %v1527, 0.044715
        %v1536 = vmul.f32 %v1528, 0.044715
        %v1537 = vmul.f32 %v1529, 0.044715
        %v1538 = vmul.f32 %v1530, 0.044715
        %v1539 = vmul.f32 %v1531, 0.044715
        %v1540 = vmul.f32 %v1532, 0.044715
        %v1541 = vmul.f32 %v1533, 0.044715
        %v1542 = vadd.f32 %v1502, %v1534
        %v1543 = vadd.f32 %v1503, %v1535
        %v1544 = vadd.f32 %v1504, %v1536
        %v1545 = vadd.f32 %v1505, %v1537
        %v1546 = vadd.f32 %v1506, %v1538
        %v1547 = vadd.f32 %v1507, %v1539
        %v1548 = vadd.f32 %v1508, %v1540
        %v1549 = vadd.f32 %v1509, %v1541
        %v1550 = vmul.f32 %v1542, 0.7978846
        %v1551 = vmul.f32 %v1543, 0.7978846
        %v1552 = vmul.f32 %v1544, 0.7978846
        %v1553 = vmul.f32 %v1545, 0.7978846
        %v1554 = vmul.f32 %v1546, 0.7978846
        %v1555 = vmul.f32 %v1547, 0.7978846
        %v1556 = vmul.f32 %v1548, 0.7978846
        %v1557 = vmul.f32 %v1549, 0.7978846
        %v1558 = vtanh.pop %v1550
        %v1559 = vtanh.pop %v1551
        %v1560 = vtanh.pop %v1552
        %v1561 = vtanh.pop %v1553
        %v1562 = vtanh.pop %v1554
        %v1563 = vtanh.pop %v1555
        %v1564 = vtanh.pop %v1556
        %v1565 = vtanh.pop %v1557
        %v1566 = vadd.f32 %v1558, 1.0
        %v1567 = vadd.f32 %v1559, 1.0
        %v1568 = vadd.f32 %v1560, 1.0
        %v1569 = vadd.f32 %v1561, 1.0
        %v1570 = vadd.f32 %v1562, 1.0
        %v1571 = vadd.f32 %v1563, 1.0
        %v1572 = vadd.f32 %v1564, 1.0
        %v1573 = vadd.f32 %v1565, 1.0
        %v1574 = vmul.f32 %v1510, %v1566
        %v1575 = vmul.f32 %v1511, %v1567
        %v1576 = vmul.f32 %v1512, %v1568
        %v1577 = vmul.f32 %v1513, %v1569
        %v1578 = vmul.f32 %v1514, %v1570
        %v1579 = vmul.f32 %v1515, %v1571
        %v1580 = vmul.f32 %v1516, %v1572
        %v1581 = vmul.f32 %v1517, %v1573
        %v1582 = vmul.f32 %v1574, %v632
        %v1583 = vmul.f32 %v1575, %v632
        %v1584 = vmul.f32 %v1576, %v632
        %v1585 = vmul.f32 %v1577, %v632
        %v1586 = vmul.f32 %v1578, %v632
        %v1587 = vmul.f32 %v1579, %v632
        %v1588 = vmul.f32 %v1580, %v632
        %v1589 = vmul.f32 %v1581, %v632
        %v1590 = vadd.f32 %v1582, %v646
        %v1591 = vadd.f32 %v1583, %v646
        %v1592 = vadd.f32 %v1584, %v646
        %v1593 = vadd.f32 %v1585, %v646
        %v1594 = vadd.f32 %v1586, %v646
        %v1595 = vadd.f32 %v1587, %v646
        %v1596 = vadd.f32 %v1588, %v646
        %v1597 = vadd.f32 %v1589, %v646
        %v1598 = vadd.f32 %v1590, %v1338
        %v1599 = vadd.f32 %v1591, %v1339
        %v1600 = vadd.f32 %v1592, %v1340
        %v1601 = vadd.f32 %v1593, %v1341
        %v1602 = vadd.f32 %v1594, %v1342
        %v1603 = vadd.f32 %v1595, %v1343
        %v1604 = vadd.f32 %v1596, %v1344
        %v1605 = vadd.f32 %v1597, %v1345
        %s1606 = scalar_lea.vmem %s293, 192 [#allocation7]
        %1607 = vst [vmem:[%s1606] sm:$0xff] %v1598
        %1608 = vst [vmem:[%s1606 + $0x8] sm:$0xff] %v1599
        %1609 = vst [vmem:[%s1606 + $0x10] sm:$0xff] %v1600
        %1610 = vst [vmem:[%s1606 + $0x18] sm:$0xff] %v1601
        %1611 = vst [vmem:[%s1606 + $0x20] sm:$0xff] %v1602
        %1612 = vst [vmem:[%s1606 + $0x28] sm:$0xff] %v1603
        %1613 = vst [vmem:[%s1606 + $0x30] sm:$0xff] %v1604
        %1614 = vst [vmem:[%s1606 + $0x38] sm:$0xff] %v1605
        %s1615 = sand.u32 %s152, 1
        %s1616 = scalar_lea.sflag [#allocation4], %s1615
        %s1617 = sand.u32 %s152, 1
        %s1618 = smul.addr %s1617, 256
        %s1619 = scalar_lea.vmem [#allocation7], %s1618
        // Predicated region
        $region45: #{tpu_custom_call.1} parent=35 // pred_check
          %p1620 = pneg %p162
        $region46: #{tpu_custom_call.1} parent=35 // pred_check_branch
          %1622 = sbr.rel (%p1620) target = $region48
        $region47: #{tpu_custom_call.1} parent=35 // pred_region
          %s1624 = ssub.s32 4096, 4096
          %1625 = vsyncadd %s1616, %s1624
          %s1626 = smul.addr %s29, 64
          %s1627 = sadd.s32 %s28, %s1626
          %s1628 = smul.addr %s1627, 128
          %s1629 = scalar_lea.hbm %s4, %s1628
          %s1630 = sshll.u32 %s1619, 4
          %s1631 = int_to_ptr.vmem [resolvable:$true] %s1630
          %1636 = dma.vmem_to_hbm [thread:$0]  %s1631, 4096, %s1629, %s1616, 128, 256, 8
        $region48: #{tpu_custom_call.1} parent=35 // pred_fallthru
          _
      $region36: #{tpu_custom_call.1} parent=5 // pred_fallthru
        _
      %p1637 = scmp.le.s32.totalorder 2, %s19
      // Predicated region
      $region49: #{tpu_custom_call.1} parent=5 // pred_check
        %p1638 = pneg %p1637
      $region50: #{tpu_custom_call.1} parent=5 // pred_check_branch
        %1640 = sbr.rel (%p1638) target = $region52
      $region51: #{tpu_custom_call.1} parent=5 // pred_region
        %s1641 = ssub.s32 %s19, 2
        // Predicated region
        $region53: #{tpu_custom_call.1} parent=51 // pred_check
          %p1642 = pneg %p168
        $region54: #{tpu_custom_call.1} parent=51 // pred_check_branch
          %1644 = sbr.rel (%p1642) target = $region56
        $region55: #{tpu_custom_call.1} parent=51 // pred_region
          %s1645 = sand.u32 %s153, 1
          %s1646 = scalar_lea.sflag [#allocation4], %s1645
          %s1647 = sand.u32 %s153, 1
          %s1648 = smul.addr %s1647, 256
          %s1649 = scalar_lea.vmem [#allocation7], %s1648
          %1650 = dma.done %s1646, 4096
        $region56: #{tpu_custom_call.1} parent=51 // pred_fallthru
          _
      $region52: #{tpu_custom_call.1} parent=5 // pred_fallthru
        _
    $region6: #{tpu_custom_call.1} parent=1 // loop_footer
      %s23 = sadd.s32 1, %s19
    $region7: #{tpu_custom_call.1} parent=1 // loop_footer_branch
      %18 = sbr.rel target = $region3
    $region8: #{tpu_custom_call.1} parent=1 // loop_exit
      _
    %1651 = vsyncpa [#allocation3], 1
    %s1652 = scalar_lea.sflag [#allocation3], 1
    %1653 = vsyncpa %s1652, 1
    %1654 = vsyncpa [#allocation6], 1
    %s1655 = scalar_lea.sflag [#allocation6], 1
    %1656 = vsyncpa %s1655, 1
    %1657 = vsyncpa [#allocation4], 1
    %s1658 = scalar_lea.sflag [#allocation4], 1
    %1659 = vsyncpa %s1658, 1

</llo_original>
